<compile_context>
chip_gen: v7x
topology: tpu7x:2x2x1
jax: 0.10.0
libtpu: 0.0.40
codegen_flags: <defaults>
</compile_context>

<pallas_src>
import functools

import jax
import jax.numpy as jnp
from jax import lax
from jax.experimental import pallas as pl
from jax.experimental.pallas import tpu as pltpu


def _nss_kernel(x_ref, w2_ref, bc_ref, wl_ref, bl_ref, o_ref,
                im2col_ref, grp_ref, pooled_f_ref, pooled_r_ref,
                *, kernel_size, channels, hidden, n_block, group, lout_chunk,
                mode):
    """One grid step = `n_block` samples, processed in groups of `group`."""
    K = kernel_size
    C = channels
    H = hidden
    H2 = 2 * H
    Nb = n_block
    G = group
    L = x_ref.shape[2]
    L_out = L - K + 1

    # Hoisted once per grid step (review: no re-loads inside the hot loop).
    w2 = w2_ref[...]                     # (2H, K*C) bf16, fwd|rev strands on rows
    bcol = bc_ref[...]                   # (2H, 1) f32 conv bias column

    def per_group(g, carry):
        base = pl.multiple_of(g * G, G)
        for j in range(G):                                   # static unroll
            xi = x_ref[base + j]                             # (C, L) bf16, lane-dense
            # im2col: row k*C + c holds x[c, l + k]; K small & static.
            for k in range(K):
                im2col_ref[k * C:(k + 1) * C, :] = xi[:, k:k + L_out]
            # Chunk over output positions so (2H, cl) stays a small working set.
            acc = jnp.zeros((H2, 1), jnp.float32)
            for c0 in range(0, L_out, lout_chunk):           # static chunk loop
                cl = min(lout_chunk, L_out - c0)
                a = im2col_ref[:, c0:c0 + cl]                # (K*C, cl) bf16
                z = jnp.dot(w2, a,
                            preferred_element_type=jnp.float32)   # (2H, cl) f32
                z = jnp.maximum(z + bcol, 0.0)               # bias + ReLU (f32)
                acc = acc + jnp.sum(z, axis=1, keepdims=True)
            grp_ref[:, j:j + 1] = acc                        # static column store
        # One sublane-aligned (G, H) tile store per strand per group
        # (review: no per-sample masked single-row stores).
        pooled_f_ref[pl.ds(base, G), :] = jnp.transpose(grp_ref[0:H, :])
        pooled_r_ref[pl.ds(base, G), :] = jnp.transpose(grp_ref[H:H2, :])
        return carry

    lax.fori_loop(0, Nb // G, per_group, None)

    # Batched final linear for the whole block; the 1/L_out pool scale (and the
    # 0.5 strand average for mode='mean') is folded into wl on the host.
    pf = pooled_f_ref[...]                                   # (Nb, H) f32
    pr = pooled_r_ref[...]                                   # (Nb, H) f32
    wl = wl_ref[...]                                         # (H, T) f32 (scaled)
    bl = bl_ref[...]                                         # (1, T) f32
    if mode == "mean":
        out = jnp.dot(pf + pr, wl, preferred_element_type=jnp.float32) + bl
    else:  # 'max': strands stay separate until the elementwise max.
        out_f = jnp.dot(pf, wl, preferred_element_type=jnp.float32) + bl
        out_r = jnp.dot(pr, wl, preferred_element_type=jnp.float32) + bl
        out = jnp.maximum(out_f, out_r)
    o_ref[...] = out.astype(o_ref.dtype)


def non_strand_specific_forward(x, params, *, mode="mean", batch_block=128,
                                lout_chunk=512):
    """x: (N, C, L) float32 (PyTorch Conv1d NCL layout). params: model weights."""
    if mode not in ("mean", "max"):
        raise ValueError("Mode should be one of 'mean' or 'max'.")

    wc, bc, wl, bl = params["wc"], params["bc"], params["wl"], params["bl"]
    N, C, L = x.shape
    K, H, _ = wc.shape
    T = wl.shape[1]
    L_out = L - K + 1

    # ---- host-side, weight-only preprocessing (tiny, done once) -------------
    # Reverse-complement strand via flipped conv weights:
    #   pool(ReLU(conv(revcomp(x), wc) + bc)) == pool(ReLU(conv(x, wc_rev) + bc))
    wc_rev = wc[::-1, :, ::-1]                                # (K, H, C)
    wc_both = jnp.concatenate([wc, wc_rev], axis=1)           # (K, 2H, C)
    # Fused im2col weights: W2[h, k*C + c] = wc_both[k, h, c]  (K*C-deep dot).
    w2 = jnp.transpose(wc_both, (1, 0, 2)).reshape(2 * H, K * C)
    w2 = w2.astype(jnp.bfloat16)                              # bf16 MXU operand
    bc_col = jnp.concatenate([bc, bc], axis=0).astype(jnp.float32)   # (2H, 1)

    # Fold mean-pool scale (and the 0.5 strand average for 'mean') into wl.
    scale = (0.5 if mode == "mean" else 1.0) / L_out
    wl_eff = (wl * scale).astype(jnp.float32)                 # (H, T)
    bl_row = bl.reshape(1, T).astype(jnp.float32)

    # x stays in its native (N, C, L) layout: L is the lane (minor) dim, so the
    # VMEM block is lane-dense; only C pads to the sublane tile.
    x_b = x.astype(jnp.bfloat16)

    # ---- batch blocking ------------------------------------------------------
    group = 8                                  # samples per pooled-tile store
    total_groups = pl.cdiv(N, group)
    if total_groups >= 2:
        # keep >= 2 grid steps so the batch axis can shard across TensorCores
        groups_per_block = min(max(1, batch_block // group),
                               pl.cdiv(total_groups, 2))
    else:
        groups_per_block = 1
    nb = groups_per_block * group
    n_pad = pl.cdiv(N, nb) * nb
    if n_pad != N:
        x_b = jnp.pad(x_b, ((0, n_pad - N), (0, 0), (0, 0)))
    grid = (n_pad // nb,)

    kernel = functools.partial(
        _nss_kernel, kernel_size=K, channels=C, hidden=H, n_block=nb,
        group=group, lout_chunk=lout_chunk, mode=mode)

    out = pl.pallas_call(
        kernel,
        out_shape=jax.ShapeDtypeStruct((n_pad, T), jnp.float32),
        grid_spec=pltpu.PrefetchScalarGridSpec(
            num_scalar_prefetch=0,
            grid=grid,
            in_specs=[
                pl.BlockSpec((nb, C, L), lambda b: (b, 0, 0)),      # x block
                # Grid-invariant weights: constant index maps, fetched once.
                pl.BlockSpec((2 * H, K * C), lambda b: (0, 0)),     # fused conv w
                pl.BlockSpec((2 * H, 1), lambda b: (0, 0)),         # conv bias col
                pl.BlockSpec((H, T), lambda b: (0, 0)),             # linear w (scaled)
                pl.BlockSpec((1, T), lambda b: (0, 0)),             # linear bias
            ],
            out_specs=pl.BlockSpec((nb, T), lambda b: (b, 0)),
            scratch_shapes=[
                pltpu.VMEM((K * C, L_out), jnp.bfloat16),   # per-sample im2col
                pltpu.VMEM((2 * H, group), jnp.float32),    # per-group pooled cols
                pltpu.VMEM((nb, H), jnp.float32),           # pooled, forward strand
                pltpu.VMEM((nb, H), jnp.float32),           # pooled, reverse strand
            ],
        ),
        compiler_params=pltpu.CompilerParams(
            dimension_semantics=("parallel",),
            vmem_limit_bytes=64 * 1024 * 1024),
    )(x_b, w2, bc_col, wl_eff, bl_row)
    return out[:N]


def _reference(x, params, mode):
    """Pure-JAX reference (matches the kernel's bf16 operand rounding)."""
    wc = params["wc"].astype(jnp.bfloat16).astype(jnp.float32)
    bc, wl, bl = params["bc"], params["wl"], params["bl"]
    xq = x.astype(jnp.bfloat16).astype(jnp.float32)
    K = wc.shape[0]
    L_out = x.shape[2] - K + 1

    def model(inp):  # (N, C, L)
        acc = jnp.zeros((inp.shape[0], wc.shape[1], L_out), jnp.float32)
        for k in range(K):
            acc = acc + jnp.einsum("hc,ncl->nhl", wc[k], inp[:, :, k:k + L_out])
        acc = jnp.maximum(acc + bc[None, :, :], 0.0)
        pooled = jnp.mean(acc, axis=2)                       # (N, H)
        return pooled @ wl + bl                              # (N, T)

    o1 = model(xq)
    o2 = model(jnp.flip(jnp.flip(xq, axis=1), axis=2))
    return (o1 + o2) / 2 if mode == "mean" else jnp.maximum(o1, o2)


if __name__ == "__main__":
    # Small shapes consistent with the module: DNA batch (N, 4 bases, length).
    N, C, L = 2, 4, 16
    K, H, T = 3, 32, 8

    key = jax.random.PRNGKey(0)
    k1, k2, k3, k4, k5 = jax.random.split(key, 5)

    x = jax.random.normal(k1, (N, C, L), dtype=jnp.float32)
    params = {
        "wc": jax.random.normal(k2, (K, H, C), dtype=jnp.float32) * 0.1,
        "bc": jax.random.normal(k3, (H, 1), dtype=jnp.float32) * 0.1,
        "wl": jax.random.normal(k4, (H, T), dtype=jnp.float32) * 0.1,
        "bl": jax.random.normal(k5, (1, T), dtype=jnp.float32) * 0.1,
    }

    for mode in ("mean", "max"):
        out = jax.block_until_ready(
            non_strand_specific_forward(x, params, mode=mode))
        ref = _reference(x, params, mode)
        assert out.shape == (N, T)
        assert jnp.allclose(out, ref, atol=1e-3, rtol=1e-3), (
            f"mismatch for mode={mode}:\n{out}\nvs\n{ref}")

    print("KERNEL_OK")
</pallas_src>

<mosaic_0001>
module attributes {stable_mosaic.version = 11 : i64} {
  func.func @_nss_kernel(%arg0: i32, %arg1: memref<8x4x16xbf16, #tpu.memory_space<vmem>>, %arg2: memref<64x12xbf16, #tpu.memory_space<vmem>>, %arg3: memref<64x1xf32, #tpu.memory_space<vmem>>, %arg4: memref<32x8xf32, #tpu.memory_space<vmem>>, %arg5: memref<1x8xf32, #tpu.memory_space<vmem>>, %arg6: memref<8x8xf32, #tpu.memory_space<vmem>>, %arg7: memref<12x14xbf16, #tpu.memory_space<vmem>>, %arg8: memref<64x8xf32, #tpu.memory_space<vmem>>, %arg9: memref<8x32xf32, #tpu.memory_space<vmem>>, %arg10: memref<8x32xf32, #tpu.memory_space<vmem>>) attributes {dimension_semantics = [#tpu.dimension_semantics<parallel>], iteration_bounds = array<i64: 1>, scalar_prefetch = 0 : i64, scratch_operands = 4 : i64, tpu.core_type = #tpu.core_type<tc>, window_params = [{transform_indices = @transform_0, window_bounds = array<i64: 8, 4, 16>}, {pipeline_mode = #tpu.pipeline_mode<synchronous>, transform_indices = @transform_1, window_bounds = array<i64: 64, 12>}, {pipeline_mode = #tpu.pipeline_mode<synchronous>, transform_indices = @transform_2, window_bounds = array<i64: 64, 1>}, {pipeline_mode = #tpu.pipeline_mode<synchronous>, transform_indices = @transform_3, window_bounds = array<i64: 32, 8>}, {pipeline_mode = #tpu.pipeline_mode<synchronous>, transform_indices = @transform_4, window_bounds = array<i64: 1, 8>}, {transform_indices = @transform_5, window_bounds = array<i64: 8, 8>}]} {
    %c0 = arith.constant 0 : index
    %c0_0 = arith.constant 0 : index
    %0 = vector.load %arg2[%c0, %c0_0] : memref<64x12xbf16, #tpu.memory_space<vmem>>, vector<64x12xbf16>
    %c0_1 = arith.constant 0 : index
    %c0_2 = arith.constant 0 : index
    %1 = vector.load %arg3[%c0_1, %c0_2] : memref<64x1xf32, #tpu.memory_space<vmem>>, vector<64x1xf32>
    %c0_i32 = arith.constant 0 : i32
    %c8_i32 = arith.constant 8 : i32
    %2 = arith.muli %c0_i32, %c8_i32 : i32
    %3 = tpu.assume_multiple %2, 8 : i32
    %c0_i32_3 = arith.constant 0 : i32
    %4 = arith.addi %3, %c0_i32_3 : i32
    %5 = arith.index_cast %4 : i32 to index
    %c0_4 = arith.constant 0 : index
    %c0_5 = arith.constant 0 : index
    %6 = vector.load %arg1[%5, %c0_4, %c0_5] : memref<8x4x16xbf16, #tpu.memory_space<vmem>>, vector<1x4x16xbf16>
    %7 = vector.shape_cast %6 : vector<1x4x16xbf16> to vector<4x16xbf16>
    %8 = vector.extract_strided_slice %7 {offsets = [0, 0], sizes = [4, 14], strides = [1, 1]} : vector<4x16xbf16> to vector<4x14xbf16>
    %c0_6 = arith.constant 0 : index
    %c0_7 = arith.constant 0 : index
    %9 = vector.load %arg7[%c0_6, %c0_7] : memref<12x14xbf16, #tpu.memory_space<vmem>>, vector<4x14xbf16>
    tpu.vector_store %arg7[%c0_6, %c0_7], %8 {strides = array<i32>} : memref<12x14xbf16, #tpu.memory_space<vmem>>, vector<4x14xbf16>,
    %10 = vector.extract_strided_slice %7 {offsets = [0, 1], sizes = [4, 14], strides = [1, 1]} : vector<4x16xbf16> to vector<4x14xbf16>
    %c4 = arith.constant 4 : index
    %c0_8 = arith.constant 0 : index
    %11 = vector.load %arg7[%c4, %c0_8] : memref<12x14xbf16, #tpu.memory_space<vmem>>, vector<4x14xbf16>
    tpu.vector_store %arg7[%c4, %c0_8], %10 {strides = array<i32>} : memref<12x14xbf16, #tpu.memory_space<vmem>>, vector<4x14xbf16>,
    %12 = vector.extract_strided_slice %7 {offsets = [0, 2], sizes = [4, 14], strides = [1, 1]} : vector<4x16xbf16> to vector<4x14xbf16>
    %c8 = arith.constant 8 : index
    %c0_9 = arith.constant 0 : index
    %13 = vector.load %arg7[%c8, %c0_9] : memref<12x14xbf16, #tpu.memory_space<vmem>>, vector<4x14xbf16>
    tpu.vector_store %arg7[%c8, %c0_9], %12 {strides = array<i32>} : memref<12x14xbf16, #tpu.memory_space<vmem>>, vector<4x14xbf16>,
    %cst = arith.constant 0.000000e+00 : f32
    %14 = vector.broadcast %cst : f32 to vector<64x1xf32>
    %c0_10 = arith.constant 0 : index
    %c0_11 = arith.constant 0 : index
    %15 = vector.load %arg7[%c0_10, %c0_11] : memref<12x14xbf16, #tpu.memory_space<vmem>>, vector<12x14xbf16>
    %cst_12 = arith.constant dense<0.000000e+00> : vector<64x14xf32>
    %16 = tpu.matmul %0, %15, %cst_12 {dimension_numbers = #tpu.dot_dimension_numbers<[1], [0], [0], [1], [0, 0, 1, 1], [], []>} : vector<64x12xbf16>, vector<12x14xbf16>, vector<64x14xf32> -> vector<64x14xf32>
    %17 = vector.broadcast %1 : vector<64x1xf32> to vector<64x14xf32>
    %18 = arith.addf %16, %17 : vector<64x14xf32>
    %cst_13 = arith.constant 0.000000e+00 : f32
    %19 = vector.broadcast %cst_13 : f32 to vector<64x14xf32>
    %20 = arith.maximumf %18, %19 : vector<64x14xf32>
    %cst_14 = arith.constant dense<0.000000e+00> : vector<64xf32>
    %21 = vector.multi_reduction <add>, %20, %cst_14 [1] : vector<64x14xf32> to vector<64xf32>
    %22 = vector.shape_cast %21 : vector<64xf32> to vector<64x1xf32>
    %23 = arith.addf %14, %22 : vector<64x1xf32>
    %c0_15 = arith.constant 0 : index
    %c0_16 = arith.constant 0 : index
    %24 = vector.load %arg8[%c0_15, %c0_16] : memref<64x8xf32, #tpu.memory_space<vmem>>, vector<64x1xf32>
    tpu.vector_store %arg8[%c0_15, %c0_16], %23 {strides = array<i32>} : memref<64x8xf32, #tpu.memory_space<vmem>>, vector<64x1xf32>,
    %c1_i32 = arith.constant 1 : i32
    %25 = arith.addi %3, %c1_i32 : i32
    %26 = arith.index_cast %25 : i32 to index
    %c0_17 = arith.constant 0 : index
    %c0_18 = arith.constant 0 : index
    %27 = vector.load %arg1[%26, %c0_17, %c0_18] : memref<8x4x16xbf16, #tpu.memory_space<vmem>>, vector<1x4x16xbf16>
    %28 = vector.shape_cast %27 : vector<1x4x16xbf16> to vector<4x16xbf16>
    %29 = vector.extract_strided_slice %28 {offsets = [0, 0], sizes = [4, 14], strides = [1, 1]} : vector<4x16xbf16> to vector<4x14xbf16>
    %c0_19 = arith.constant 0 : index
    %c0_20 = arith.constant 0 : index
    %30 = vector.load %arg7[%c0_19, %c0_20] : memref<12x14xbf16, #tpu.memory_space<vmem>>, vector<4x14xbf16>
    tpu.vector_store %arg7[%c0_19, %c0_20], %29 {strides = array<i32>} : memref<12x14xbf16, #tpu.memory_space<vmem>>, vector<4x14xbf16>,
    %31 = vector.extract_strided_slice %28 {offsets = [0, 1], sizes = [4, 14], strides = [1, 1]} : vector<4x16xbf16> to vector<4x14xbf16>
    %c4_21 = arith.constant 4 : index
    %c0_22 = arith.constant 0 : index
    %32 = vector.load %arg7[%c4_21, %c0_22] : memref<12x14xbf16, #tpu.memory_space<vmem>>, vector<4x14xbf16>
    tpu.vector_store %arg7[%c4_21, %c0_22], %31 {strides = array<i32>} : memref<12x14xbf16, #tpu.memory_space<vmem>>, vector<4x14xbf16>,
    %33 = vector.extract_strided_slice %28 {offsets = [0, 2], sizes = [4, 14], strides = [1, 1]} : vector<4x16xbf16> to vector<4x14xbf16>
    %c8_23 = arith.constant 8 : index
    %c0_24 = arith.constant 0 : index
    %34 = vector.load %arg7[%c8_23, %c0_24] : memref<12x14xbf16, #tpu.memory_space<vmem>>, vector<4x14xbf16>
    tpu.vector_store %arg7[%c8_23, %c0_24], %33 {strides = array<i32>} : memref<12x14xbf16, #tpu.memory_space<vmem>>, vector<4x14xbf16>,
    %cst_25 = arith.constant 0.000000e+00 : f32
    %35 = vector.broadcast %cst_25 : f32 to vector<64x1xf32>
    %c0_26 = arith.constant 0 : index
    %c0_27 = arith.constant 0 : index
    %36 = vector.load %arg7[%c0_26, %c0_27] : memref<12x14xbf16, #tpu.memory_space<vmem>>, vector<12x14xbf16>
    %cst_28 = arith.constant dense<0.000000e+00> : vector<64x14xf32>
    %37 = tpu.matmul %0, %36, %cst_28 {dimension_numbers = #tpu.dot_dimension_numbers<[1], [0], [0], [1], [0, 0, 1, 1], [], []>} : vector<64x12xbf16>, vector<12x14xbf16>, vector<64x14xf32> -> vector<64x14xf32>
    %38 = vector.broadcast %1 : vector<64x1xf32> to vector<64x14xf32>
    %39 = arith.addf %37, %38 : vector<64x14xf32>
    %cst_29 = arith.constant 0.000000e+00 : f32
    %40 = vector.broadcast %cst_29 : f32 to vector<64x14xf32>
    %41 = arith.maximumf %39, %40 : vector<64x14xf32>
    %cst_30 = arith.constant dense<0.000000e+00> : vector<64xf32>
    %42 = vector.multi_reduction <add>, %41, %cst_30 [1] : vector<64x14xf32> to vector<64xf32>
    %43 = vector.shape_cast %42 : vector<64xf32> to vector<64x1xf32>
    %44 = arith.addf %35, %43 : vector<64x1xf32>
    %c0_31 = arith.constant 0 : index
    %c1 = arith.constant 1 : index
    %45 = vector.load %arg8[%c0_31, %c1] : memref<64x8xf32, #tpu.memory_space<vmem>>, vector<64x1xf32>
    tpu.vector_store %arg8[%c0_31, %c1], %44 {strides = array<i32>} : memref<64x8xf32, #tpu.memory_space<vmem>>, vector<64x1xf32>,
    %c2_i32 = arith.constant 2 : i32
    %46 = arith.addi %3, %c2_i32 : i32
    %47 = arith.index_cast %46 : i32 to index
    %c0_32 = arith.constant 0 : index
    %c0_33 = arith.constant 0 : index
    %48 = vector.load %arg1[%47, %c0_32, %c0_33] : memref<8x4x16xbf16, #tpu.memory_space<vmem>>, vector<1x4x16xbf16>
    %49 = vector.shape_cast %48 : vector<1x4x16xbf16> to vector<4x16xbf16>
    %50 = vector.extract_strided_slice %49 {offsets = [0, 0], sizes = [4, 14], strides = [1, 1]} : vector<4x16xbf16> to vector<4x14xbf16>
    %c0_34 = arith.constant 0 : index
    %c0_35 = arith.constant 0 : index
    %51 = vector.load %arg7[%c0_34, %c0_35] : memref<12x14xbf16, #tpu.memory_space<vmem>>, vector<4x14xbf16>
    tpu.vector_store %arg7[%c0_34, %c0_35], %50 {strides = array<i32>} : memref<12x14xbf16, #tpu.memory_space<vmem>>, vector<4x14xbf16>,
    %52 = vector.extract_strided_slice %49 {offsets = [0, 1], sizes = [4, 14], strides = [1, 1]} : vector<4x16xbf16> to vector<4x14xbf16>
    %c4_36 = arith.constant 4 : index
    %c0_37 = arith.constant 0 : index
    %53 = vector.load %arg7[%c4_36, %c0_37] : memref<12x14xbf16, #tpu.memory_space<vmem>>, vector<4x14xbf16>
    tpu.vector_store %arg7[%c4_36, %c0_37], %52 {strides = array<i32>} : memref<12x14xbf16, #tpu.memory_space<vmem>>, vector<4x14xbf16>,
    %54 = vector.extract_strided_slice %49 {offsets = [0, 2], sizes = [4, 14], strides = [1, 1]} : vector<4x16xbf16> to vector<4x14xbf16>
    %c8_38 = arith.constant 8 : index
    %c0_39 = arith.constant 0 : index
    %55 = vector.load %arg7[%c8_38, %c0_39] : memref<12x14xbf16, #tpu.memory_space<vmem>>, vector<4x14xbf16>
    tpu.vector_store %arg7[%c8_38, %c0_39], %54 {strides = array<i32>} : memref<12x14xbf16, #tpu.memory_space<vmem>>, vector<4x14xbf16>,
    %cst_40 = arith.constant 0.000000e+00 : f32
    %56 = vector.broadcast %cst_40 : f32 to vector<64x1xf32>
    %c0_41 = arith.constant 0 : index
    %c0_42 = arith.constant 0 : index
    %57 = vector.load %arg7[%c0_41, %c0_42] : memref<12x14xbf16, #tpu.memory_space<vmem>>, vector<12x14xbf16>
    %cst_43 = arith.constant dense<0.000000e+00> : vector<64x14xf32>
    %58 = tpu.matmul %0, %57, %cst_43 {dimension_numbers = #tpu.dot_dimension_numbers<[1], [0], [0], [1], [0, 0, 1, 1], [], []>} : vector<64x12xbf16>, vector<12x14xbf16>, vector<64x14xf32> -> vector<64x14xf32>
    %59 = vector.broadcast %1 : vector<64x1xf32> to vector<64x14xf32>
    %60 = arith.addf %58, %59 : vector<64x14xf32>
    %cst_44 = arith.constant 0.000000e+00 : f32
    %61 = vector.broadcast %cst_44 : f32 to vector<64x14xf32>
    %62 = arith.maximumf %60, %61 : vector<64x14xf32>
    %cst_45 = arith.constant dense<0.000000e+00> : vector<64xf32>
    %63 = vector.multi_reduction <add>, %62, %cst_45 [1] : vector<64x14xf32> to vector<64xf32>
    %64 = vector.shape_cast %63 : vector<64xf32> to vector<64x1xf32>
    %65 = arith.addf %56, %64 : vector<64x1xf32>
    %c0_46 = arith.constant 0 : index
    %c2 = arith.constant 2 : index
    %66 = vector.load %arg8[%c0_46, %c2] : memref<64x8xf32, #tpu.memory_space<vmem>>, vector<64x1xf32>
    tpu.vector_store %arg8[%c0_46, %c2], %65 {strides = array<i32>} : memref<64x8xf32, #tpu.memory_space<vmem>>, vector<64x1xf32>,
    %c3_i32 = arith.constant 3 : i32
    %67 = arith.addi %3, %c3_i32 : i32
    %68 = arith.index_cast %67 : i32 to index
    %c0_47 = arith.constant 0 : index
    %c0_48 = arith.constant 0 : index
    %69 = vector.load %arg1[%68, %c0_47, %c0_48] : memref<8x4x16xbf16, #tpu.memory_space<vmem>>, vector<1x4x16xbf16>
    %70 = vector.shape_cast %69 : vector<1x4x16xbf16> to vector<4x16xbf16>
    %71 = vector.extract_strided_slice %70 {offsets = [0, 0], sizes = [4, 14], strides = [1, 1]} : vector<4x16xbf16> to vector<4x14xbf16>
    %c0_49 = arith.constant 0 : index
    %c0_50 = arith.constant 0 : index
    %72 = vector.load %arg7[%c0_49, %c0_50] : memref<12x14xbf16, #tpu.memory_space<vmem>>, vector<4x14xbf16>
    tpu.vector_store %arg7[%c0_49, %c0_50], %71 {strides = array<i32>} : memref<12x14xbf16, #tpu.memory_space<vmem>>, vector<4x14xbf16>,
    %73 = vector.extract_strided_slice %70 {offsets = [0, 1], sizes = [4, 14], strides = [1, 1]} : vector<4x16xbf16> to vector<4x14xbf16>
    %c4_51 = arith.constant 4 : index
    %c0_52 = arith.constant 0 : index
    %74 = vector.load %arg7[%c4_51, %c0_52] : memref<12x14xbf16, #tpu.memory_space<vmem>>, vector<4x14xbf16>
    tpu.vector_store %arg7[%c4_51, %c0_52], %73 {strides = array<i32>} : memref<12x14xbf16, #tpu.memory_space<vmem>>, vector<4x14xbf16>,
    %75 = vector.extract_strided_slice %70 {offsets = [0, 2], sizes = [4, 14], strides = [1, 1]} : vector<4x16xbf16> to vector<4x14xbf16>
    %c8_53 = arith.constant 8 : index
    %c0_54 = arith.constant 0 : index
    %76 = vector.load %arg7[%c8_53, %c0_54] : memref<12x14xbf16, #tpu.memory_space<vmem>>, vector<4x14xbf16>
    tpu.vector_store %arg7[%c8_53, %c0_54], %75 {strides = array<i32>} : memref<12x14xbf16, #tpu.memory_space<vmem>>, vector<4x14xbf16>,
    %cst_55 = arith.constant 0.000000e+00 : f32
    %77 = vector.broadcast %cst_55 : f32 to vector<64x1xf32>
    %c0_56 = arith.constant 0 : index
    %c0_57 = arith.constant 0 : index
    %78 = vector.load %arg7[%c0_56, %c0_57] : memref<12x14xbf16, #tpu.memory_space<vmem>>, vector<12x14xbf16>
    %cst_58 = arith.constant dense<0.000000e+00> : vector<64x14xf32>
    %79 = tpu.matmul %0, %78, %cst_58 {dimension_numbers = #tpu.dot_dimension_numbers<[1], [0], [0], [1], [0, 0, 1, 1], [], []>} : vector<64x12xbf16>, vector<12x14xbf16>, vector<64x14xf32> -> vector<64x14xf32>
    %80 = vector.broadcast %1 : vector<64x1xf32> to vector<64x14xf32>
    %81 = arith.addf %79, %80 : vector<64x14xf32>
    %cst_59 = arith.constant 0.000000e+00 : f32
    %82 = vector.broadcast %cst_59 : f32 to vector<64x14xf32>
    %83 = arith.maximumf %81, %82 : vector<64x14xf32>
    %cst_60 = arith.constant dense<0.000000e+00> : vector<64xf32>
    %84 = vector.multi_reduction <add>, %83, %cst_60 [1] : vector<64x14xf32> to vector<64xf32>
    %85 = vector.shape_cast %84 : vector<64xf32> to vector<64x1xf32>
    %86 = arith.addf %77, %85 : vector<64x1xf32>
    %c0_61 = arith.constant 0 : index
    %c3 = arith.constant 3 : index
    %87 = vector.load %arg8[%c0_61, %c3] : memref<64x8xf32, #tpu.memory_space<vmem>>, vector<64x1xf32>
    tpu.vector_store %arg8[%c0_61, %c3], %86 {strides = array<i32>} : memref<64x8xf32, #tpu.memory_space<vmem>>, vector<64x1xf32>,
    %c4_i32 = arith.constant 4 : i32
    %88 = arith.addi %3, %c4_i32 : i32
    %89 = arith.index_cast %88 : i32 to index
    %c0_62 = arith.constant 0 : index
    %c0_63 = arith.constant 0 : index
    %90 = vector.load %arg1[%89, %c0_62, %c0_63] : memref<8x4x16xbf16, #tpu.memory_space<vmem>>, vector<1x4x16xbf16>
    %91 = vector.shape_cast %90 : vector<1x4x16xbf16> to vector<4x16xbf16>
    %92 = vector.extract_strided_slice %91 {offsets = [0, 0], sizes = [4, 14], strides = [1, 1]} : vector<4x16xbf16> to vector<4x14xbf16>
    %c0_64 = arith.constant 0 : index
    %c0_65 = arith.constant 0 : index
    %93 = vector.load %arg7[%c0_64, %c0_65] : memref<12x14xbf16, #tpu.memory_space<vmem>>, vector<4x14xbf16>
    tpu.vector_store %arg7[%c0_64, %c0_65], %92 {strides = array<i32>} : memref<12x14xbf16, #tpu.memory_space<vmem>>, vector<4x14xbf16>,
    %94 = vector.extract_strided_slice %91 {offsets = [0, 1], sizes = [4, 14], strides = [1, 1]} : vector<4x16xbf16> to vector<4x14xbf16>
    %c4_66 = arith.constant 4 : index
    %c0_67 = arith.constant 0 : index
    %95 = vector.load %arg7[%c4_66, %c0_67] : memref<12x14xbf16, #tpu.memory_space<vmem>>, vector<4x14xbf16>
    tpu.vector_store %arg7[%c4_66, %c0_67], %94 {strides = array<i32>} : memref<12x14xbf16, #tpu.memory_space<vmem>>, vector<4x14xbf16>,
    %96 = vector.extract_strided_slice %91 {offsets = [0, 2], sizes = [4, 14], strides = [1, 1]} : vector<4x16xbf16> to vector<4x14xbf16>
    %c8_68 = arith.constant 8 : index
    %c0_69 = arith.constant 0 : index
    %97 = vector.load %arg7[%c8_68, %c0_69] : memref<12x14xbf16, #tpu.memory_space<vmem>>, vector<4x14xbf16>
    tpu.vector_store %arg7[%c8_68, %c0_69], %96 {strides = array<i32>} : memref<12x14xbf16, #tpu.memory_space<vmem>>, vector<4x14xbf16>,
    %cst_70 = arith.constant 0.000000e+00 : f32
    %98 = vector.broadcast %cst_70 : f32 to vector<64x1xf32>
    %c0_71 = arith.constant 0 : index
    %c0_72 = arith.constant 0 : index
    %99 = vector.load %arg7[%c0_71, %c0_72] : memref<12x14xbf16, #tpu.memory_space<vmem>>, vector<12x14xbf16>
    %cst_73 = arith.constant dense<0.000000e+00> : vector<64x14xf32>
    %100 = tpu.matmul %0, %99, %cst_73 {dimension_numbers = #tpu.dot_dimension_numbers<[1], [0], [0], [1], [0, 0, 1, 1], [], []>} : vector<64x12xbf16>, vector<12x14xbf16>, vector<64x14xf32> -> vector<64x14xf32>
    %101 = vector.broadcast %1 : vector<64x1xf32> to vector<64x14xf32>
    %102 = arith.addf %100, %101 : vector<64x14xf32>
    %cst_74 = arith.constant 0.000000e+00 : f32
    %103 = vector.broadcast %cst_74 : f32 to vector<64x14xf32>
    %104 = arith.maximumf %102, %103 : vector<64x14xf32>
    %cst_75 = arith.constant dense<0.000000e+00> : vector<64xf32>
    %105 = vector.multi_reduction <add>, %104, %cst_75 [1] : vector<64x14xf32> to vector<64xf32>
    %106 = vector.shape_cast %105 : vector<64xf32> to vector<64x1xf32>
    %107 = arith.addf %98, %106 : vector<64x1xf32>
    %c0_76 = arith.constant 0 : index
    %c4_77 = arith.constant 4 : index
    %108 = vector.load %arg8[%c0_76, %c4_77] : memref<64x8xf32, #tpu.memory_space<vmem>>, vector<64x1xf32>
    tpu.vector_store %arg8[%c0_76, %c4_77], %107 {strides = array<i32>} : memref<64x8xf32, #tpu.memory_space<vmem>>, vector<64x1xf32>,
    %c5_i32 = arith.constant 5 : i32
    %109 = arith.addi %3, %c5_i32 : i32
    %110 = arith.index_cast %109 : i32 to index
    %c0_78 = arith.constant 0 : index
    %c0_79 = arith.constant 0 : index
    %111 = vector.load %arg1[%110, %c0_78, %c0_79] : memref<8x4x16xbf16, #tpu.memory_space<vmem>>, vector<1x4x16xbf16>
    %112 = vector.shape_cast %111 : vector<1x4x16xbf16> to vector<4x16xbf16>
    %113 = vector.extract_strided_slice %112 {offsets = [0, 0], sizes = [4, 14], strides = [1, 1]} : vector<4x16xbf16> to vector<4x14xbf16>
    %c0_80 = arith.constant 0 : index
    %c0_81 = arith.constant 0 : index
    %114 = vector.load %arg7[%c0_80, %c0_81] : memref<12x14xbf16, #tpu.memory_space<vmem>>, vector<4x14xbf16>
    tpu.vector_store %arg7[%c0_80, %c0_81], %113 {strides = array<i32>} : memref<12x14xbf16, #tpu.memory_space<vmem>>, vector<4x14xbf16>,
    %115 = vector.extract_strided_slice %112 {offsets = [0, 1], sizes = [4, 14], strides = [1, 1]} : vector<4x16xbf16> to vector<4x14xbf16>
    %c4_82 = arith.constant 4 : index
    %c0_83 = arith.constant 0 : index
    %116 = vector.load %arg7[%c4_82, %c0_83] : memref<12x14xbf16, #tpu.memory_space<vmem>>, vector<4x14xbf16>
    tpu.vector_store %arg7[%c4_82, %c0_83], %115 {strides = array<i32>} : memref<12x14xbf16, #tpu.memory_space<vmem>>, vector<4x14xbf16>,
    %117 = vector.extract_strided_slice %112 {offsets = [0, 2], sizes = [4, 14], strides = [1, 1]} : vector<4x16xbf16> to vector<4x14xbf16>
    %c8_84 = arith.constant 8 : index
    %c0_85 = arith.constant 0 : index
    %118 = vector.load %arg7[%c8_84, %c0_85] : memref<12x14xbf16, #tpu.memory_space<vmem>>, vector<4x14xbf16>
    tpu.vector_store %arg7[%c8_84, %c0_85], %117 {strides = array<i32>} : memref<12x14xbf16, #tpu.memory_space<vmem>>, vector<4x14xbf16>,
    %cst_86 = arith.constant 0.000000e+00 : f32
    %119 = vector.broadcast %cst_86 : f32 to vector<64x1xf32>
    %c0_87 = arith.constant 0 : index
    %c0_88 = arith.constant 0 : index
    %120 = vector.load %arg7[%c0_87, %c0_88] : memref<12x14xbf16, #tpu.memory_space<vmem>>, vector<12x14xbf16>
    %cst_89 = arith.constant dense<0.000000e+00> : vector<64x14xf32>
    %121 = tpu.matmul %0, %120, %cst_89 {dimension_numbers = #tpu.dot_dimension_numbers<[1], [0], [0], [1], [0, 0, 1, 1], [], []>} : vector<64x12xbf16>, vector<12x14xbf16>, vector<64x14xf32> -> vector<64x14xf32>
    %122 = vector.broadcast %1 : vector<64x1xf32> to vector<64x14xf32>
    %123 = arith.addf %121, %122 : vector<64x14xf32>
    %cst_90 = arith.constant 0.000000e+00 : f32
    %124 = vector.broadcast %cst_90 : f32 to vector<64x14xf32>
    %125 = arith.maximumf %123, %124 : vector<64x14xf32>
    %cst_91 = arith.constant dense<0.000000e+00> : vector<64xf32>
    %126 = vector.multi_reduction <add>, %125, %cst_91 [1] : vector<64x14xf32> to vector<64xf32>
    %127 = vector.shape_cast %126 : vector<64xf32> to vector<64x1xf32>
    %128 = arith.addf %119, %127 : vector<64x1xf32>
    %c0_92 = arith.constant 0 : index
    %c5 = arith.constant 5 : index
    %129 = vector.load %arg8[%c0_92, %c5] : memref<64x8xf32, #tpu.memory_space<vmem>>, vector<64x1xf32>
    tpu.vector_store %arg8[%c0_92, %c5], %128 {strides = array<i32>} : memref<64x8xf32, #tpu.memory_space<vmem>>, vector<64x1xf32>,
    %c6_i32 = arith.constant 6 : i32
    %130 = arith.addi %3, %c6_i32 : i32
    %131 = arith.index_cast %130 : i32 to index
    %c0_93 = arith.constant 0 : index
    %c0_94 = arith.constant 0 : index
    %132 = vector.load %arg1[%131, %c0_93, %c0_94] : memref<8x4x16xbf16, #tpu.memory_space<vmem>>, vector<1x4x16xbf16>
    %133 = vector.shape_cast %132 : vector<1x4x16xbf16> to vector<4x16xbf16>
    %134 = vector.extract_strided_slice %133 {offsets = [0, 0], sizes = [4, 14], strides = [1, 1]} : vector<4x16xbf16> to vector<4x14xbf16>
    %c0_95 = arith.constant 0 : index
    %c0_96 = arith.constant 0 : index
    %135 = vector.load %arg7[%c0_95, %c0_96] : memref<12x14xbf16, #tpu.memory_space<vmem>>, vector<4x14xbf16>
    tpu.vector_store %arg7[%c0_95, %c0_96], %134 {strides = array<i32>} : memref<12x14xbf16, #tpu.memory_space<vmem>>, vector<4x14xbf16>,
    %136 = vector.extract_strided_slice %133 {offsets = [0, 1], sizes = [4, 14], strides = [1, 1]} : vector<4x16xbf16> to vector<4x14xbf16>
    %c4_97 = arith.constant 4 : index
    %c0_98 = arith.constant 0 : index
    %137 = vector.load %arg7[%c4_97, %c0_98] : memref<12x14xbf16, #tpu.memory_space<vmem>>, vector<4x14xbf16>
    tpu.vector_store %arg7[%c4_97, %c0_98], %136 {strides = array<i32>} : memref<12x14xbf16, #tpu.memory_space<vmem>>, vector<4x14xbf16>,
    %138 = vector.extract_strided_slice %133 {offsets = [0, 2], sizes = [4, 14], strides = [1, 1]} : vector<4x16xbf16> to vector<4x14xbf16>
    %c8_99 = arith.constant 8 : index
    %c0_100 = arith.constant 0 : index
    %139 = vector.load %arg7[%c8_99, %c0_100] : memref<12x14xbf16, #tpu.memory_space<vmem>>, vector<4x14xbf16>
    tpu.vector_store %arg7[%c8_99, %c0_100], %138 {strides = array<i32>} : memref<12x14xbf16, #tpu.memory_space<vmem>>, vector<4x14xbf16>,
    %cst_101 = arith.constant 0.000000e+00 : f32
    %140 = vector.broadcast %cst_101 : f32 to vector<64x1xf32>
    %c0_102 = arith.constant 0 : index
    %c0_103 = arith.constant 0 : index
    %141 = vector.load %arg7[%c0_102, %c0_103] : memref<12x14xbf16, #tpu.memory_space<vmem>>, vector<12x14xbf16>
    %cst_104 = arith.constant dense<0.000000e+00> : vector<64x14xf32>
    %142 = tpu.matmul %0, %141, %cst_104 {dimension_numbers = #tpu.dot_dimension_numbers<[1], [0], [0], [1], [0, 0, 1, 1], [], []>} : vector<64x12xbf16>, vector<12x14xbf16>, vector<64x14xf32> -> vector<64x14xf32>
    %143 = vector.broadcast %1 : vector<64x1xf32> to vector<64x14xf32>
    %144 = arith.addf %142, %143 : vector<64x14xf32>
    %cst_105 = arith.constant 0.000000e+00 : f32
    %145 = vector.broadcast %cst_105 : f32 to vector<64x14xf32>
    %146 = arith.maximumf %144, %145 : vector<64x14xf32>
    %cst_106 = arith.constant dense<0.000000e+00> : vector<64xf32>
    %147 = vector.multi_reduction <add>, %146, %cst_106 [1] : vector<64x14xf32> to vector<64xf32>
    %148 = vector.shape_cast %147 : vector<64xf32> to vector<64x1xf32>
    %149 = arith.addf %140, %148 : vector<64x1xf32>
    %c0_107 = arith.constant 0 : index
    %c6 = arith.constant 6 : index
    %150 = vector.load %arg8[%c0_107, %c6] : memref<64x8xf32, #tpu.memory_space<vmem>>, vector<64x1xf32>
    tpu.vector_store %arg8[%c0_107, %c6], %149 {strides = array<i32>} : memref<64x8xf32, #tpu.memory_space<vmem>>, vector<64x1xf32>,
    %c7_i32 = arith.constant 7 : i32
    %151 = arith.addi %3, %c7_i32 : i32
    %152 = arith.index_cast %151 : i32 to index
    %c0_108 = arith.constant 0 : index
    %c0_109 = arith.constant 0 : index
    %153 = vector.load %arg1[%152, %c0_108, %c0_109] : memref<8x4x16xbf16, #tpu.memory_space<vmem>>, vector<1x4x16xbf16>
    %154 = vector.shape_cast %153 : vector<1x4x16xbf16> to vector<4x16xbf16>
    %155 = vector.extract_strided_slice %154 {offsets = [0, 0], sizes = [4, 14], strides = [1, 1]} : vector<4x16xbf16> to vector<4x14xbf16>
    %c0_110 = arith.constant 0 : index
    %c0_111 = arith.constant 0 : index
    %156 = vector.load %arg7[%c0_110, %c0_111] : memref<12x14xbf16, #tpu.memory_space<vmem>>, vector<4x14xbf16>
    tpu.vector_store %arg7[%c0_110, %c0_111], %155 {strides = array<i32>} : memref<12x14xbf16, #tpu.memory_space<vmem>>, vector<4x14xbf16>,
    %157 = vector.extract_strided_slice %154 {offsets = [0, 1], sizes = [4, 14], strides = [1, 1]} : vector<4x16xbf16> to vector<4x14xbf16>
    %c4_112 = arith.constant 4 : index
    %c0_113 = arith.constant 0 : index
    %158 = vector.load %arg7[%c4_112, %c0_113] : memref<12x14xbf16, #tpu.memory_space<vmem>>, vector<4x14xbf16>
    tpu.vector_store %arg7[%c4_112, %c0_113], %157 {strides = array<i32>} : memref<12x14xbf16, #tpu.memory_space<vmem>>, vector<4x14xbf16>,
    %159 = vector.extract_strided_slice %154 {offsets = [0, 2], sizes = [4, 14], strides = [1, 1]} : vector<4x16xbf16> to vector<4x14xbf16>
    %c8_114 = arith.constant 8 : index
    %c0_115 = arith.constant 0 : index
    %160 = vector.load %arg7[%c8_114, %c0_115] : memref<12x14xbf16, #tpu.memory_space<vmem>>, vector<4x14xbf16>
    tpu.vector_store %arg7[%c8_114, %c0_115], %159 {strides = array<i32>} : memref<12x14xbf16, #tpu.memory_space<vmem>>, vector<4x14xbf16>,
    %cst_116 = arith.constant 0.000000e+00 : f32
    %161 = vector.broadcast %cst_116 : f32 to vector<64x1xf32>
    %c0_117 = arith.constant 0 : index
    %c0_118 = arith.constant 0 : index
    %162 = vector.load %arg7[%c0_117, %c0_118] : memref<12x14xbf16, #tpu.memory_space<vmem>>, vector<12x14xbf16>
    %cst_119 = arith.constant dense<0.000000e+00> : vector<64x14xf32>
    %163 = tpu.matmul %0, %162, %cst_119 {dimension_numbers = #tpu.dot_dimension_numbers<[1], [0], [0], [1], [0, 0, 1, 1], [], []>} : vector<64x12xbf16>, vector<12x14xbf16>, vector<64x14xf32> -> vector<64x14xf32>
    %164 = vector.broadcast %1 : vector<64x1xf32> to vector<64x14xf32>
    %165 = arith.addf %163, %164 : vector<64x14xf32>
    %cst_120 = arith.constant 0.000000e+00 : f32
    %166 = vector.broadcast %cst_120 : f32 to vector<64x14xf32>
    %167 = arith.maximumf %165, %166 : vector<64x14xf32>
    %cst_121 = arith.constant dense<0.000000e+00> : vector<64xf32>
    %168 = vector.multi_reduction <add>, %167, %cst_121 [1] : vector<64x14xf32> to vector<64xf32>
    %169 = vector.shape_cast %168 : vector<64xf32> to vector<64x1xf32>
    %170 = arith.addf %161, %169 : vector<64x1xf32>
    %c0_122 = arith.constant 0 : index
    %c7 = arith.constant 7 : index
    %171 = vector.load %arg8[%c0_122, %c7] : memref<64x8xf32, #tpu.memory_space<vmem>>, vector<64x1xf32>
    tpu.vector_store %arg8[%c0_122, %c7], %170 {strides = array<i32>} : memref<64x8xf32, #tpu.memory_space<vmem>>, vector<64x1xf32>,
    %c0_123 = arith.constant 0 : index
    %c0_124 = arith.constant 0 : index
    %172 = vector.load %arg8[%c0_123, %c0_124] : memref<64x8xf32, #tpu.memory_space<vmem>>, vector<32x8xf32>
    %173 = tpu.transpose %172, [1, 0] : vector<32x8xf32> -> vector<8x32xf32>
    %174 = arith.index_cast %3 : i32 to index
    %c0_125 = arith.constant 0 : index
    %175 = vector.load %arg9[%174, %c0_125] : memref<8x32xf32, #tpu.memory_space<vmem>>, vector<8x32xf32>
    tpu.vector_store %arg9[%174, %c0_125], %173 {strides = array<i32>} : memref<8x32xf32, #tpu.memory_space<vmem>>, vector<8x32xf32>,
    %c32 = arith.constant 32 : index
    %c0_126 = arith.constant 0 : index
    %176 = vector.load %arg8[%c32, %c0_126] : memref<64x8xf32, #tpu.memory_space<vmem>>, vector<32x8xf32>
    %177 = tpu.transpose %176, [1, 0] : vector<32x8xf32> -> vector<8x32xf32>
    %178 = arith.index_cast %3 : i32 to index
    %c0_127 = arith.constant 0 : index
    %179 = vector.load %arg10[%178, %c0_127] : memref<8x32xf32, #tpu.memory_space<vmem>>, vector<8x32xf32>
    tpu.vector_store %arg10[%178, %c0_127], %177 {strides = array<i32>} : memref<8x32xf32, #tpu.memory_space<vmem>>, vector<8x32xf32>,
    %c1_i32_128 = arith.constant 1 : i32
    %c0_129 = arith.constant 0 : index
    %c0_130 = arith.constant 0 : index
    %180 = vector.load %arg9[%c0_129, %c0_130] : memref<8x32xf32, #tpu.memory_space<vmem>>, vector<8x32xf32>
    %c0_131 = arith.constant 0 : index
    %c0_132 = arith.constant 0 : index
    %181 = vector.load %arg10[%c0_131, %c0_132] : memref<8x32xf32, #tpu.memory_space<vmem>>, vector<8x32xf32>
    %c0_133 = arith.constant 0 : index
    %c0_134 = arith.constant 0 : index
    %182 = vector.load %arg4[%c0_133, %c0_134] : memref<32x8xf32, #tpu.memory_space<vmem>>, vector<32x8xf32>
    %c0_135 = arith.constant 0 : index
    %c0_136 = arith.constant 0 : index
    %183 = vector.load %arg5[%c0_135, %c0_136] : memref<1x8xf32, #tpu.memory_space<vmem>>, vector<1x8xf32>
    %184 = arith.addf %180, %181 : vector<8x32xf32>
    %cst_137 = arith.constant dense<0.000000e+00> : vector<8x8xf32>
    %185 = tpu.matmul %184, %182, %cst_137 {dimension_numbers = #tpu.dot_dimension_numbers<[1], [0], [0], [1], [0, 0, 1, 1], [], []>} : vector<8x32xf32>, vector<32x8xf32>, vector<8x8xf32> -> vector<8x8xf32>
    %186 = vector.broadcast %183 : vector<1x8xf32> to vector<8x8xf32>
    %187 = arith.addf %185, %186 : vector<8x8xf32>
    %c0_138 = arith.constant 0 : index
    %c0_139 = arith.constant 0 : index
    %188 = vector.load %arg6[%c0_138, %c0_139] : memref<8x8xf32, #tpu.memory_space<vmem>>, vector<8x8xf32>
    tpu.vector_store %arg6[%c0_138, %c0_139], %187 {strides = array<i32>} : memref<8x8xf32, #tpu.memory_space<vmem>>, vector<8x8xf32>,
    return
  }
  func.func @transform_0(%arg0: i32) -> (i32, i32, i32) {
    %c0_i32 = arith.constant 0 : i32
    %c0_i32_0 = arith.constant 0 : i32
    %c0_i32_1 = arith.constant 0 : i32
    return %arg0, %c0_i32, %c0_i32_0 : i32, i32, i32
  }
  func.func @transform_1(%arg0: i32) -> (i32, i32) {
    %c0_i32 = arith.constant 0 : i32
    %c0_i32_0 = arith.constant 0 : i32
    %c0_i32_1 = arith.constant 0 : i32
    return %c0_i32, %c0_i32_0 : i32, i32
  }
  func.func @transform_2(%arg0: i32) -> (i32, i32) {
    %c0_i32 = arith.constant 0 : i32
    %c0_i32_0 = arith.constant 0 : i32
    %c0_i32_1 = arith.constant 0 : i32
    return %c0_i32, %c0_i32_0 : i32, i32
  }
  func.func @transform_3(%arg0: i32) -> (i32, i32) {
    %c0_i32 = arith.constant 0 : i32
    %c0_i32_0 = arith.constant 0 : i32
    %c0_i32_1 = arith.constant 0 : i32
    return %c0_i32, %c0_i32_0 : i32, i32
  }
  func.func @transform_4(%arg0: i32) -> (i32, i32) {
    %c0_i32 = arith.constant 0 : i32
    %c0_i32_0 = arith.constant 0 : i32
    %c0_i32_1 = arith.constant 0 : i32
    return %c0_i32, %c0_i32_0 : i32, i32
  }
  func.func @transform_5(%arg0: i32) -> (i32, i32) {
    %c0_i32 = arith.constant 0 : i32
    %c0_i32_0 = arith.constant 0 : i32
    return %arg0, %c0_i32 : i32, i32
  }
}

</mosaic_0001>

<llo_original>
// kernel: tpu_custom_call.1
$region0: #{tpu_custom_call.1}
  #allocation0 [shape = 'u32[]', space=smem, size = 0x4, offset = 0x4, fixed_abs, tag = 'smem constant byte address 0x4 - core index']
  #allocation1 [shape = 'u32[144,128]{1,0:T(1,128)}', space=vmem, size = 0x12000, scoped, tag = 'internal scratch']
  #allocation2 [shape = 'bf16[12,14]{1,0:T(8,128)(2,1)}', space=vmem, size = 0x1000, scoped, tag = 'scratch operand']
  #allocation3 [shape = 'f32[64,8]{1,0:T(8,128)}', space=vmem, size = 0x8000, scoped, tag = 'scratch operand']
  #allocation4 [shape = 'f32[8,32]{1,0:T(8,128)}', space=vmem, size = 0x1000, scoped, tag = 'scratch operand']
  #allocation5 [shape = 'f32[8,32]{1,0:T(8,128)}', space=vmem, size = 0x1000, scoped, tag = 'scratch operand']
  %s0 = inlined_call_operand.hbm [shape: bf16[8,4,16], index: 0, kind: input, shape index: {}]
  %s1 = inlined_call_operand.hbm [shape: bf16[64,12], index: 1, kind: input, shape index: {}]
  %s2 = inlined_call_operand.hbm [shape: f32[64,1], index: 2, kind: input, shape index: {}]
  %s3 = inlined_call_operand.hbm [shape: f32[32,8], index: 3, kind: input, shape index: {}]
  %s4 = inlined_call_operand.hbm [shape: f32[1,8], index: 4, kind: input, shape index: {}]
  %s5 = inlined_call_operand.hbm [shape: f32[8,8], index: 5, kind: output, shape index: {}]
  %s6 = sld [smem:[#allocation0]]
  $region50: #{tpu_custom_call.1} parent=0
    _
  %s8 = ssub.s32 1, %s6
  %s9 = scalar_select 0, %s8, %s6
  $region1: #{tpu_custom_call.1} parent=0
    #allocation6 [shape = 'u8[8192]{0}', space=vmem, size = 0x2000, scoped, tag = 'input window, operand 0, single buffered']
    #allocation7 [shape = 's32[1]{0}', space=sflag, size = 0x4, scoped, tag = 'scoped memory for tpu_custom_call.1']
    #allocation8 [shape = 's32[1]{0}', space=sflag, size = 0x4, scoped, tag = 'scoped memory for tpu_custom_call.1']
    #allocation9 [shape = 'u8[16384]{0}', space=vmem, size = 0x4000, scoped, tag = 'input window, operand 1, single buffered']
    #allocation10 [shape = 's32[1]{0}', space=sflag, size = 0x4, scoped, tag = 'scoped memory for tpu_custom_call.1']
    #allocation11 [shape = 'u8[32768]{0}', space=vmem, size = 0x8000, scoped, tag = 'input window, operand 2, single buffered']
    #allocation12 [shape = 'u8[16384]{0}', space=vmem, size = 0x4000, scoped, tag = 'input window, operand 3, single buffered']
    #allocation13 [shape = 's32[1]{0}', space=sflag, size = 0x4, scoped, tag = 'scoped memory for tpu_custom_call.1']
    #allocation14 [shape = 'u8[512]{0}', space=vmem, size = 0x400, scoped, tag = 'input window, operand 4, single buffered']
    #allocation15 [shape = 'u8[4096]{0}', space=vmem, size = 0x1000, scoped, tag = 'output window, operand 0, single buffered']
    %10 = vsyncpa [#allocation7], 0
    %11 = vsyncpa [#allocation10], 0
    %12 = vsyncpa [#allocation13], 0
    %13 = vsyncpa [#allocation8], 0
    // Predicated region
    $region2: #{tpu_custom_call.1} parent=1 // pred_check
      _
    $region3: #{tpu_custom_call.1} parent=1 // pred_check_branch
      %15 = sbr.rel (0) target = $region5
    $region4: #{tpu_custom_call.1} parent=1 // pred_region
      %s17 = ssub.s32 256, 256
      %18 = vsyncadd [#allocation7], %s17
      %s19 = sshll.u32 [#allocation6], 4
      %s20 = int_to_ptr.vmem [resolvable:$true] %s19
      %25 = dma.hbm_to_vmem [thread:$0]  %s0, 256, %s20, [#allocation7], 32, 32, 2
    $region5: #{tpu_custom_call.1} parent=1 // pred_fallthru
      _
    // Predicated region
    $region6: #{tpu_custom_call.1} parent=1 // pred_check
      _
    $region7: #{tpu_custom_call.1} parent=1 // pred_check_branch
      %27 = sbr.rel (0) target = $region9
    $region8: #{tpu_custom_call.1} parent=1 // pred_region
      %s29 = ssub.s32 512, 512
      %30 = vsyncadd [#allocation10], %s29
      %s31 = sshll.u32 [#allocation9], 4
      %s32 = int_to_ptr.vmem [resolvable:$true] %s31
      %37 = dma.hbm_to_vmem [thread:$0]  %s1, 512, %s32, [#allocation10], 64, 64, 4
    $region9: #{tpu_custom_call.1} parent=1 // pred_fallthru
      _
    // Predicated region
    $region10: #{tpu_custom_call.1} parent=1 // pred_check
      _
    $region11: #{tpu_custom_call.1} parent=1 // pred_check_branch
      %39 = sbr.rel (0) target = $region13
    $region12: #{tpu_custom_call.1} parent=1 // pred_region
      %s41 = ssub.s32 1024, 1024
      %42 = vsyncadd [#allocation10], %s41
      %s43 = sshll.u32 [#allocation11], 4
      %s44 = int_to_ptr.vmem [resolvable:$true] %s43
      %49 = dma.hbm_to_vmem [thread:$0]  %s2, 1024, %s44, [#allocation10], 128, 128, 8
    $region13: #{tpu_custom_call.1} parent=1 // pred_fallthru
      _
    // Predicated region
    $region14: #{tpu_custom_call.1} parent=1 // pred_check
      _
    $region15: #{tpu_custom_call.1} parent=1 // pred_check_branch
      %51 = sbr.rel (0) target = $region17
    $region16: #{tpu_custom_call.1} parent=1 // pred_region
      %s53 = ssub.s32 512, 512
      %54 = vsyncadd [#allocation13], %s53
      %s55 = sshll.u32 [#allocation12], 4
      %s56 = int_to_ptr.vmem [resolvable:$true] %s55
      %61 = dma.hbm_to_vmem [thread:$0]  %s3, 512, %s56, [#allocation13], 128, 128, 8
    $region17: #{tpu_custom_call.1} parent=1 // pred_fallthru
      _
    // Predicated region
    $region18: #{tpu_custom_call.1} parent=1 // pred_check
      _
    $region19: #{tpu_custom_call.1} parent=1 // pred_check_branch
      %63 = sbr.rel (0) target = $region21
    $region20: #{tpu_custom_call.1} parent=1 // pred_region
      %s65 = ssub.s32 16, 16
      %66 = vsyncadd [#allocation13], %s65
      %s68 = sshll.u32 [#allocation14], 4
      %s69 = int_to_ptr.vmem [resolvable:$true] %s68
      %71 = dma.hbm_to_vmem [thread:$0]  %s4, 16, %s69, [#allocation13]
    $region21: #{tpu_custom_call.1} parent=1 // pred_fallthru
      _
    // Predicated region
    $region22: #{tpu_custom_call.1} parent=1 // pred_check
      _
    $region23: #{tpu_custom_call.1} parent=1 // pred_check_branch
      %73 = sbr.rel (0) target = $region25
    $region24: #{tpu_custom_call.1} parent=1 // pred_region
      %74 = dma.done [#allocation7], 256
    $region25: #{tpu_custom_call.1} parent=1 // pred_fallthru
      _
    // Predicated region
    $region26: #{tpu_custom_call.1} parent=1 // pred_check
      _
    $region27: #{tpu_custom_call.1} parent=1 // pred_check_branch
      %76 = sbr.rel (0) target = $region29
    $region28: #{tpu_custom_call.1} parent=1 // pred_region
      %77 = dma.done [#allocation10], 512
    $region29: #{tpu_custom_call.1} parent=1 // pred_fallthru
      _
    // Predicated region
    $region30: #{tpu_custom_call.1} parent=1 // pred_check
      _
    $region31: #{tpu_custom_call.1} parent=1 // pred_check_branch
      %79 = sbr.rel (0) target = $region33
    $region32: #{tpu_custom_call.1} parent=1 // pred_region
      %80 = dma.done [#allocation10], 1024
    $region33: #{tpu_custom_call.1} parent=1 // pred_fallthru
      _
    // Predicated region
    $region34: #{tpu_custom_call.1} parent=1 // pred_check
      _
    $region35: #{tpu_custom_call.1} parent=1 // pred_check_branch
      %82 = sbr.rel (0) target = $region37
    $region36: #{tpu_custom_call.1} parent=1 // pred_region
      %83 = dma.done [#allocation13], 512
    $region37: #{tpu_custom_call.1} parent=1 // pred_fallthru
      _
    // Predicated region
    $region38: #{tpu_custom_call.1} parent=1 // pred_check
      _
    $region39: #{tpu_custom_call.1} parent=1 // pred_check_branch
      %85 = sbr.rel (0) target = $region41
    $region40: #{tpu_custom_call.1} parent=1 // pred_region
      %86 = dma.done [#allocation13], 16
    $region41: #{tpu_custom_call.1} parent=1 // pred_fallthru
      _
    %v88 = vld [vmem:[#allocation9] sm:$0xf]
    %v89 = vld [vmem:[#allocation9 + $0x4] sm:$0xf]
    %v90 = vld [vmem:[#allocation9 + $0x8] sm:$0xf]
    %v91 = vld [vmem:[#allocation9 + $0xc] sm:$0xf]
    %v92 = vld [vmem:[#allocation9 + $0x10] sm:$0xf]
    %v93 = vld [vmem:[#allocation9 + $0x14] sm:$0xf]
    %v94 = vld [vmem:[#allocation9 + $0x18] sm:$0xf]
    %v95 = vld [vmem:[#allocation9 + $0x1c] sm:$0xf]
    %v96 = vld [vmem:[#allocation11] sm:$0xff]
    %v97 = vld [vmem:[#allocation11 + $0x8] sm:$0xff]
    %v98 = vld [vmem:[#allocation11 + $0x10] sm:$0xff]
    %v99 = vld [vmem:[#allocation11 + $0x18] sm:$0xff]
    %v100 = vld [vmem:[#allocation11 + $0x20] sm:$0xff]
    %v101 = vld [vmem:[#allocation11 + $0x28] sm:$0xff]
    %v102 = vld [vmem:[#allocation11 + $0x30] sm:$0xff]
    %v103 = vld [vmem:[#allocation11 + $0x38] sm:$0xff]
    %v104 = vld [vmem:[#allocation6] sm:$0x3]
    %vm105 = vcmask 107520
    %106 = vst.msk [vmem:[#allocation2] sm:$0x3] %vm105, %v104
    %v108 = vcombine.low %v104, %v104
    %v110 = vunpack.c.l.s4 1983009808
    %v111 = vunpack.c.0.s8 %v110
    %v112 = vlaneseq
    %v113 = vshrl.u32 %v112, 7
    %v114 = vsub.s32 %v111, %v113
    %v115 = vrot.slane %v108, %v114
    %116 = vrot.lane.b32.xlu0 %v115, 127
    %v117 = vpop.permute.xlu0 %116
    %vm119 = vcmask 109570
    %120 = vst.msk [vmem:[#allocation2] sm:$0xc] %vm119, %v117
    %v122 = vunpack.c.l.s4 1983009808
    %v123 = vunpack.c.0.s8 %v122
    %v124 = vlaneseq
    %v125 = vshrl.u32 %v124, 7
    %v126 = vsub.s32 %v123, %v125
    %v127 = vrot.slane %v104, %v126
    %128 = vrot.lane.b32.xlu0 %v127, 126
    %v129 = vpop.permute.xlu0 %128
    %131 = vst.msk [vmem:[#allocation2 + $0x4] sm:$0x3] %vm105, %v129
    %v132 = vld [vmem:[#allocation2] sm:$0xf]
    %v133 = vld [vmem:[#allocation2 + $0x4] sm:$0x3]
    %135 = vset.pattern.permute.xlu0 0
    %136 = vperm.xlu0 %135, %v96
    %v137 = vpop.permute.xlu0 %136
    %140 = vset.pattern.permute.xlu0 0
    %141 = vperm.xlu0 %140, %v97
    %v142 = vpop.permute.xlu0 %141
    %145 = vset.pattern.permute.xlu0 0
    %146 = vperm.xlu0 %145, %v98
    %v147 = vpop.permute.xlu0 %146
    %150 = vset.pattern.permute.xlu0 0
    %151 = vperm.xlu0 %150, %v99
    %v152 = vpop.permute.xlu0 %151
    %155 = vset.pattern.permute.xlu0 0
    %156 = vperm.xlu0 %155, %v100
    %v157 = vpop.permute.xlu0 %156
    %160 = vset.pattern.permute.xlu0 0
    %161 = vperm.xlu0 %160, %v101
    %v162 = vpop.permute.xlu0 %161
    %165 = vset.pattern.permute.xlu0 0
    %166 = vperm.xlu0 %165, %v102
    %v167 = vpop.permute.xlu0 %166
    %170 = vset.pattern.permute.xlu0 0
    %171 = vperm.xlu0 %170, %v103
    %v172 = vpop.permute.xlu0 %171
    %v182 = vunpack.c.l.b16 %v88
    %v183 = vunpack.c.l.b16 %v89
    %v184 = vunpack.c.l.b16 %v90
    %v185 = vunpack.c.l.b16 %v91
    %v186 = vunpack.c.l.b16 %v92
    %v187 = vunpack.c.l.b16 %v93
    %v188 = vunpack.c.l.b16 %v94
    %v189 = vunpack.c.l.b16 %v95
    %v190 = vpack.c.b16 %v183, %v182
    %v191 = vpack.c.b16 %v185, %v184
    %v192 = vpack.c.b16 %v187, %v186
    %v193 = vpack.c.b16 %v189, %v188
    %v196 = vunpack.c.l.b16 %v132
    %v197 = vunpack.c.l.b16 %v133
    %v198 = vpack.c.b16 %v197, %v196
    %vm199 = vcmask 97280
    %v201 = vsel %vm199, %v190, 0
    %v204 = vsel %vm199, %v191, 0
    %v207 = vsel %vm199, %v192, 0
    %v210 = vsel %vm199, %v193, 0
    %vm212 = vcmask 1045504
    %v214 = vsel %vm212, %v198, 0
    %216 = vmatprep.subr.bf16.mxu0 0
    %217 = vmatpush1.bf16.msra.mxu0 %v214
    %218 = vmatprep.subr.bf16.mxu0 0
    %219 = vmatpush1.bf16.msra.mxu0 0
    %220 = vmatprep.subr.bf16.mxu0 0
    %221 = vmatpush1.bf16.msra.mxu0 0
    %222 = vmatprep.subr.bf16.mxu0 0
    %223 = vmatpush1.bf16.msra.mxu0 0
    %224 = vmatprep.subr.bf16.mxu0 0
    %225 = vmatpush1.bf16.msra.mxu0 0
    %226 = vmatprep.subr.bf16.mxu0 0
    %227 = vmatpush1.bf16.msra.mxu0 0
    %228 = vmatprep.subr.bf16.mxu0 0
    %229 = vmatpush1.bf16.msra.mxu0 0
    %230 = vmatprep.subr.bf16.mxu0 0
    %231 = vmatpush1.bf16.msra.mxu0 0
    %232 = vmatprep.subr.bf16.mxu0 0
    %233 = vmatpush1.bf16.msra.mxu0 0
    %234 = vmatprep.subr.bf16.mxu0 0
    %235 = vmatpush1.bf16.msra.mxu0 0
    %236 = vmatprep.subr.bf16.mxu0 0
    %237 = vmatpush1.bf16.msra.mxu0 0
    %238 = vmatprep.subr.bf16.mxu0 0
    %239 = vmatpush1.bf16.msra.mxu0 0
    %240 = vmatprep.subr.bf16.mxu0 0
    %241 = vmatpush1.bf16.msra.mxu0 0
    %242 = vmatprep.subr.bf16.mxu0 0
    %243 = vmatpush1.bf16.msra.mxu0 0
    %244 = vmatprep.subr.bf16.mxu0 0
    %245 = vmatpush1.bf16.msra.mxu0 0
    %246 = vmatprep.subr.bf16.mxu0 0
    %247 = vmatpush1.bf16.msra.mxu0 0
    %248 = vmatprep.mubr.bf16.mxu0 0
    %249 = vmatmul.mubr.bf16.gmra.mrb[0].mxu0 %v201
    %v250 = vpop.f32.mrb[0].mxu0
    %v251 = vadd.f32 %v137, %v250
    %v252 = vpop.f32.mrb[0].mxu0
    %v253 = vpop.f32.mrb[0].mxu0
    %v254 = vadd.f32 %v142, %v253
    %v255 = vpop.f32.mrb[0].mxu0
    %256 = vmatprep.mubr.bf16.mxu0 0
    %257 = vmatmul.mubr.bf16.gmra.mrb[0].mxu0 %v204
    %v258 = vpop.f32.mrb[0].mxu0
    %v259 = vadd.f32 %v147, %v258
    %v260 = vpop.f32.mrb[0].mxu0
    %v261 = vpop.f32.mrb[0].mxu0
    %v262 = vadd.f32 %v152, %v261
    %v263 = vpop.f32.mrb[0].mxu0
    %264 = vmatprep.mubr.bf16.mxu0 0
    %265 = vmatmul.mubr.bf16.gmra.mrb[0].mxu0 %v207
    %v266 = vpop.f32.mrb[0].mxu0
    %v267 = vadd.f32 %v157, %v266
    %v268 = vpop.f32.mrb[0].mxu0
    %v269 = vpop.f32.mrb[0].mxu0
    %v270 = vadd.f32 %v162, %v269
    %v271 = vpop.f32.mrb[0].mxu0
    %272 = vmatprep.mubr.bf16.mxu0 0
    %273 = vmatmul.mubr.bf16.gmra.mrb[0].mxu0 %v210
    %v274 = vpop.f32.mrb[0].mxu0
    %v275 = vadd.f32 %v167, %v274
    %v276 = vpop.f32.mrb[0].mxu0
    %v277 = vpop.f32.mrb[0].mxu0
    %v278 = vadd.f32 %v172, %v277
    %v279 = vpop.f32.mrb[0].mxu0
    %280 = vdwg.mxu0
    %v281 = vmax.f32 %v251, 0.0
    %v282 = vmax.f32 %v254, 0.0
    %v283 = vmax.f32 %v259, 0.0
    %v284 = vmax.f32 %v262, 0.0
    %v285 = vmax.f32 %v267, 0.0
    %v286 = vmax.f32 %v270, 0.0
    %v287 = vmax.f32 %v275, 0.0
    %v288 = vmax.f32 %v278, 0.0
    %vm289 = vcmask 113664
    %v290 = vsel %vm289, %v281, 0.0
    %291 = vadd.xlane.f32.xlu0 %v290
    %v292 = vpop.xlane.xlu0 %291
    %v293 = vsel %vm289, %v282, 0.0
    %294 = vadd.xlane.f32.xlu0 %v293
    %v295 = vpop.xlane.xlu0 %294
    %v296 = vsel %vm289, %v283, 0.0
    %297 = vadd.xlane.f32.xlu0 %v296
    %v298 = vpop.xlane.xlu0 %297
    %v299 = vsel %vm289, %v284, 0.0
    %300 = vadd.xlane.f32.xlu0 %v299
    %v301 = vpop.xlane.xlu0 %300
    %v302 = vsel %vm289, %v285, 0.0
    %303 = vadd.xlane.f32.xlu0 %v302
    %v304 = vpop.xlane.xlu0 %303
    %v305 = vsel %vm289, %v286, 0.0
    %306 = vadd.xlane.f32.xlu0 %v305
    %v307 = vpop.xlane.xlu0 %306
    %v308 = vsel %vm289, %v287, 0.0
    %309 = vadd.xlane.f32.xlu0 %v308
    %v310 = vpop.xlane.xlu0 %309
    %v311 = vsel %vm289, %v288, 0.0
    %312 = vadd.xlane.f32.xlu0 %v311
    %v313 = vpop.xlane.xlu0 %312
    %v314 = vadd.f32 %v292, 0.0
    %v315 = vadd.f32 %v295, 0.0
    %v316 = vadd.f32 %v298, 0.0
    %v317 = vadd.f32 %v301, 0.0
    %v318 = vadd.f32 %v304, 0.0
    %v319 = vadd.f32 %v307, 0.0
    %v320 = vadd.f32 %v310, 0.0
    %v321 = vadd.f32 %v313, 0.0
    %vm322 = vcmask 7168
    %323 = vst.msk [vmem:[#allocation3] sm:$0xff] %vm322, %v314
    %324 = vst.msk [vmem:[#allocation3 + $0x8] sm:$0xff] %vm322, %v315
    %325 = vst.msk [vmem:[#allocation3 + $0x10] sm:$0xff] %vm322, %v316
    %326 = vst.msk [vmem:[#allocation3 + $0x18] sm:$0xff] %vm322, %v317
    %327 = vst.msk [vmem:[#allocation3 + $0x20] sm:$0xff] %vm322, %v318
    %328 = vst.msk [vmem:[#allocation3 + $0x28] sm:$0xff] %vm322, %v319
    %329 = vst.msk [vmem:[#allocation3 + $0x30] sm:$0xff] %vm322, %v320
    %330 = vst.msk [vmem:[#allocation3 + $0x38] sm:$0xff] %vm322, %v321
    %s331 = sadd.s32 0, 1
    %s332 = smul.addr %s331, 2
    %s333 = scalar_lea.vmem [#allocation6], %s332
    %v334 = vld [vmem:[%s333] sm:$0x3]
    %335 = vst.msk [vmem:[#allocation2] sm:$0x3] %vm105, %v334
    %v337 = vcombine.low %v334, %v334
    %v339 = vunpack.c.l.s4 1983009808
    %v340 = vunpack.c.0.s8 %v339
    %v341 = vlaneseq
    %v342 = vshrl.u32 %v341, 7
    %v343 = vsub.s32 %v340, %v342
    %v344 = vrot.slane %v337, %v343
    %345 = vrot.lane.b32.xlu0 %v344, 127
    %v346 = vpop.permute.xlu0 %345
    %348 = vst.msk [vmem:[#allocation2] sm:$0xc] %vm119, %v346
    %v350 = vunpack.c.l.s4 1983009808
    %v351 = vunpack.c.0.s8 %v350
    %v352 = vlaneseq
    %v353 = vshrl.u32 %v352, 7
    %v354 = vsub.s32 %v351, %v353
    %v355 = vrot.slane %v334, %v354
    %356 = vrot.lane.b32.xlu0 %v355, 126
    %v357 = vpop.permute.xlu0 %356
    %359 = vst.msk [vmem:[#allocation2 + $0x4] sm:$0x3] %vm105, %v357
    %v360 = vld [vmem:[#allocation2] sm:$0xf]
    %v361 = vld [vmem:[#allocation2 + $0x4] sm:$0x3]
    %v364 = vunpack.c.l.b16 %v360
    %v365 = vunpack.c.l.b16 %v361
    %v366 = vpack.c.b16 %v365, %v364
    %v368 = vsel %vm212, %v366, 0
    %370 = vmatprep.subr.bf16.mxu0 0
    %371 = vmatpush1.bf16.msra.mxu0 %v368
    %372 = vmatprep.subr.bf16.mxu0 0
    %373 = vmatpush1.bf16.msra.mxu0 0
    %374 = vmatprep.subr.bf16.mxu0 0
    %375 = vmatpush1.bf16.msra.mxu0 0
    %376 = vmatprep.subr.bf16.mxu0 0
    %377 = vmatpush1.bf16.msra.mxu0 0
    %378 = vmatprep.subr.bf16.mxu0 0
    %379 = vmatpush1.bf16.msra.mxu0 0
    %380 = vmatprep.subr.bf16.mxu0 0
    %381 = vmatpush1.bf16.msra.mxu0 0
    %382 = vmatprep.subr.bf16.mxu0 0
    %383 = vmatpush1.bf16.msra.mxu0 0
    %384 = vmatprep.subr.bf16.mxu0 0
    %385 = vmatpush1.bf16.msra.mxu0 0
    %386 = vmatprep.subr.bf16.mxu0 0
    %387 = vmatpush1.bf16.msra.mxu0 0
    %388 = vmatprep.subr.bf16.mxu0 0
    %389 = vmatpush1.bf16.msra.mxu0 0
    %390 = vmatprep.subr.bf16.mxu0 0
    %391 = vmatpush1.bf16.msra.mxu0 0
    %392 = vmatprep.subr.bf16.mxu0 0
    %393 = vmatpush1.bf16.msra.mxu0 0
    %394 = vmatprep.subr.bf16.mxu0 0
    %395 = vmatpush1.bf16.msra.mxu0 0
    %396 = vmatprep.subr.bf16.mxu0 0
    %397 = vmatpush1.bf16.msra.mxu0 0
    %398 = vmatprep.subr.bf16.mxu0 0
    %399 = vmatpush1.bf16.msra.mxu0 0
    %400 = vmatprep.subr.bf16.mxu0 0
    %401 = vmatpush1.bf16.msra.mxu0 0
    %402 = vmatprep.mubr.bf16.mxu0 0
    %403 = vmatmul.mubr.bf16.gmra.mrb[0].mxu0 %v201
    %v404 = vpop.f32.mrb[0].mxu0
    %v405 = vadd.f32 %v137, %v404
    %v406 = vpop.f32.mrb[0].mxu0
    %v407 = vpop.f32.mrb[0].mxu0
    %v408 = vadd.f32 %v142, %v407
    %v409 = vpop.f32.mrb[0].mxu0
    %410 = vmatprep.mubr.bf16.mxu0 0
    %411 = vmatmul.mubr.bf16.gmra.mrb[0].mxu0 %v204
    %v412 = vpop.f32.mrb[0].mxu0
    %v413 = vadd.f32 %v147, %v412
    %v414 = vpop.f32.mrb[0].mxu0
    %v415 = vpop.f32.mrb[0].mxu0
    %v416 = vadd.f32 %v152, %v415
    %v417 = vpop.f32.mrb[0].mxu0
    %418 = vmatprep.mubr.bf16.mxu0 0
    %419 = vmatmul.mubr.bf16.gmra.mrb[0].mxu0 %v207
    %v420 = vpop.f32.mrb[0].mxu0
    %v421 = vadd.f32 %v157, %v420
    %v422 = vpop.f32.mrb[0].mxu0
    %v423 = vpop.f32.mrb[0].mxu0
    %v424 = vadd.f32 %v162, %v423
    %v425 = vpop.f32.mrb[0].mxu0
    %426 = vmatprep.mubr.bf16.mxu0 0
    %427 = vmatmul.mubr.bf16.gmra.mrb[0].mxu0 %v210
    %v428 = vpop.f32.mrb[0].mxu0
    %v429 = vadd.f32 %v167, %v428
    %v430 = vpop.f32.mrb[0].mxu0
    %v431 = vpop.f32.mrb[0].mxu0
    %v432 = vadd.f32 %v172, %v431
    %v433 = vpop.f32.mrb[0].mxu0
    %434 = vdwg.mxu0
    %v435 = vmax.f32 %v405, 0.0
    %v436 = vmax.f32 %v408, 0.0
    %v437 = vmax.f32 %v413, 0.0
    %v438 = vmax.f32 %v416, 0.0
    %v439 = vmax.f32 %v421, 0.0
    %v440 = vmax.f32 %v424, 0.0
    %v441 = vmax.f32 %v429, 0.0
    %v442 = vmax.f32 %v432, 0.0
    %v443 = vsel %vm289, %v435, 0.0
    %444 = vadd.xlane.f32.xlu0 %v443
    %v445 = vpop.xlane.xlu0 %444
    %v446 = vsel %vm289, %v436, 0.0
    %447 = vadd.xlane.f32.xlu0 %v446
    %v448 = vpop.xlane.xlu0 %447
    %v449 = vsel %vm289, %v437, 0.0
    %450 = vadd.xlane.f32.xlu0 %v449
    %v451 = vpop.xlane.xlu0 %450
    %v452 = vsel %vm289, %v438, 0.0
    %453 = vadd.xlane.f32.xlu0 %v452
    %v454 = vpop.xlane.xlu0 %453
    %v455 = vsel %vm289, %v439, 0.0
    %456 = vadd.xlane.f32.xlu0 %v455
    %v457 = vpop.xlane.xlu0 %456
    %v458 = vsel %vm289, %v440, 0.0
    %459 = vadd.xlane.f32.xlu0 %v458
    %v460 = vpop.xlane.xlu0 %459
    %v461 = vsel %vm289, %v441, 0.0
    %462 = vadd.xlane.f32.xlu0 %v461
    %v463 = vpop.xlane.xlu0 %462
    %v464 = vsel %vm289, %v442, 0.0
    %465 = vadd.xlane.f32.xlu0 %v464
    %v466 = vpop.xlane.xlu0 %465
    %v467 = vadd.f32 %v445, 0.0
    %v468 = vadd.f32 %v448, 0.0
    %v469 = vadd.f32 %v451, 0.0
    %v470 = vadd.f32 %v454, 0.0
    %v471 = vadd.f32 %v457, 0.0
    %v472 = vadd.f32 %v460, 0.0
    %v473 = vadd.f32 %v463, 0.0
    %v474 = vadd.f32 %v466, 0.0
    %vm475 = vcmask 15368
    %476 = vst.msk [vmem:[#allocation3] sm:$0xff] %vm475, %v467
    %477 = vst.msk [vmem:[#allocation3 + $0x8] sm:$0xff] %vm475, %v468
    %478 = vst.msk [vmem:[#allocation3 + $0x10] sm:$0xff] %vm475, %v469
    %479 = vst.msk [vmem:[#allocation3 + $0x18] sm:$0xff] %vm475, %v470
    %480 = vst.msk [vmem:[#allocation3 + $0x20] sm:$0xff] %vm475, %v471
    %481 = vst.msk [vmem:[#allocation3 + $0x28] sm:$0xff] %vm475, %v472
    %482 = vst.msk [vmem:[#allocation3 + $0x30] sm:$0xff] %vm475, %v473
    %483 = vst.msk [vmem:[#allocation3 + $0x38] sm:$0xff] %vm475, %v474
    %s484 = sadd.s32 0, 2
    %s485 = smul.addr %s484, 2
    %s486 = scalar_lea.vmem [#allocation6], %s485
    %v487 = vld [vmem:[%s486] sm:$0x3]
    %488 = vst.msk [vmem:[#allocation2] sm:$0x3] %vm105, %v487
    %v490 = vcombine.low %v487, %v487
    %v492 = vunpack.c.l.s4 1983009808
    %v493 = vunpack.c.0.s8 %v492
    %v494 = vlaneseq
    %v495 = vshrl.u32 %v494, 7
    %v496 = vsub.s32 %v493, %v495
    %v497 = vrot.slane %v490, %v496
    %498 = vrot.lane.b32.xlu0 %v497, 127
    %v499 = vpop.permute.xlu0 %498
    %501 = vst.msk [vmem:[#allocation2] sm:$0xc] %vm119, %v499
    %v503 = vunpack.c.l.s4 1983009808
    %v504 = vunpack.c.0.s8 %v503
    %v505 = vlaneseq
    %v506 = vshrl.u32 %v505, 7
    %v507 = vsub.s32 %v504, %v506
    %v508 = vrot.slane %v487, %v507
    %509 = vrot.lane.b32.xlu0 %v508, 126
    %v510 = vpop.permute.xlu0 %509
    %512 = vst.msk [vmem:[#allocation2 + $0x4] sm:$0x3] %vm105, %v510
    %v513 = vld [vmem:[#allocation2] sm:$0xf]
    %v514 = vld [vmem:[#allocation2 + $0x4] sm:$0x3]
    %v517 = vunpack.c.l.b16 %v513
    %v518 = vunpack.c.l.b16 %v514
    %v519 = vpack.c.b16 %v518, %v517
    %v521 = vsel %vm212, %v519, 0
    %523 = vmatprep.subr.bf16.mxu0 0
    %524 = vmatpush1.bf16.msra.mxu0 %v521
    %525 = vmatprep.subr.bf16.mxu0 0
    %526 = vmatpush1.bf16.msra.mxu0 0
    %527 = vmatprep.subr.bf16.mxu0 0
    %528 = vmatpush1.bf16.msra.mxu0 0
    %529 = vmatprep.subr.bf16.mxu0 0
    %530 = vmatpush1.bf16.msra.mxu0 0
    %531 = vmatprep.subr.bf16.mxu0 0
    %532 = vmatpush1.bf16.msra.mxu0 0
    %533 = vmatprep.subr.bf16.mxu0 0
    %534 = vmatpush1.bf16.msra.mxu0 0
    %535 = vmatprep.subr.bf16.mxu0 0
    %536 = vmatpush1.bf16.msra.mxu0 0
    %537 = vmatprep.subr.bf16.mxu0 0
    %538 = vmatpush1.bf16.msra.mxu0 0
    %539 = vmatprep.subr.bf16.mxu0 0
    %540 = vmatpush1.bf16.msra.mxu0 0
    %541 = vmatprep.subr.bf16.mxu0 0
    %542 = vmatpush1.bf16.msra.mxu0 0
    %543 = vmatprep.subr.bf16.mxu0 0
    %544 = vmatpush1.bf16.msra.mxu0 0
    %545 = vmatprep.subr.bf16.mxu0 0
    %546 = vmatpush1.bf16.msra.mxu0 0
    %547 = vmatprep.subr.bf16.mxu0 0
    %548 = vmatpush1.bf16.msra.mxu0 0
    %549 = vmatprep.subr.bf16.mxu0 0
    %550 = vmatpush1.bf16.msra.mxu0 0
    %551 = vmatprep.subr.bf16.mxu0 0
    %552 = vmatpush1.bf16.msra.mxu0 0
    %553 = vmatprep.subr.bf16.mxu0 0
    %554 = vmatpush1.bf16.msra.mxu0 0
    %555 = vmatprep.mubr.bf16.mxu0 0
    %556 = vmatmul.mubr.bf16.gmra.mrb[0].mxu0 %v201
    %v557 = vpop.f32.mrb[0].mxu0
    %v558 = vadd.f32 %v137, %v557
    %v559 = vpop.f32.mrb[0].mxu0
    %v560 = vpop.f32.mrb[0].mxu0
    %v561 = vadd.f32 %v142, %v560
    %v562 = vpop.f32.mrb[0].mxu0
    %563 = vmatprep.mubr.bf16.mxu0 0
    %564 = vmatmul.mubr.bf16.gmra.mrb[0].mxu0 %v204
    %v565 = vpop.f32.mrb[0].mxu0
    %v566 = vadd.f32 %v147, %v565
    %v567 = vpop.f32.mrb[0].mxu0
    %v568 = vpop.f32.mrb[0].mxu0
    %v569 = vadd.f32 %v152, %v568
    %v570 = vpop.f32.mrb[0].mxu0
    %571 = vmatprep.mubr.bf16.mxu0 0
    %572 = vmatmul.mubr.bf16.gmra.mrb[0].mxu0 %v207
    %v573 = vpop.f32.mrb[0].mxu0
    %v574 = vadd.f32 %v157, %v573
    %v575 = vpop.f32.mrb[0].mxu0
    %v576 = vpop.f32.mrb[0].mxu0
    %v577 = vadd.f32 %v162, %v576
    %v578 = vpop.f32.mrb[0].mxu0
    %579 = vmatprep.mubr.bf16.mxu0 0
    %580 = vmatmul.mubr.bf16.gmra.mrb[0].mxu0 %v210
    %v581 = vpop.f32.mrb[0].mxu0
    %v582 = vadd.f32 %v167, %v581
    %v583 = vpop.f32.mrb[0].mxu0
    %v584 = vpop.f32.mrb[0].mxu0
    %v585 = vadd.f32 %v172, %v584
    %v586 = vpop.f32.mrb[0].mxu0
    %587 = vdwg.mxu0
    %v588 = vmax.f32 %v558, 0.0
    %v589 = vmax.f32 %v561, 0.0
    %v590 = vmax.f32 %v566, 0.0
    %v591 = vmax.f32 %v569, 0.0
    %v592 = vmax.f32 %v574, 0.0
    %v593 = vmax.f32 %v577, 0.0
    %v594 = vmax.f32 %v582, 0.0
    %v595 = vmax.f32 %v585, 0.0
    %v596 = vsel %vm289, %v588, 0.0
    %597 = vadd.xlane.f32.xlu0 %v596
    %v598 = vpop.xlane.xlu0 %597
    %v599 = vsel %vm289, %v589, 0.0
    %600 = vadd.xlane.f32.xlu0 %v599
    %v601 = vpop.xlane.xlu0 %600
    %v602 = vsel %vm289, %v590, 0.0
    %603 = vadd.xlane.f32.xlu0 %v602
    %v604 = vpop.xlane.xlu0 %603
    %v605 = vsel %vm289, %v591, 0.0
    %606 = vadd.xlane.f32.xlu0 %v605
    %v607 = vpop.xlane.xlu0 %606
    %v608 = vsel %vm289, %v592, 0.0
    %609 = vadd.xlane.f32.xlu0 %v608
    %v610 = vpop.xlane.xlu0 %609
    %v611 = vsel %vm289, %v593, 0.0
    %612 = vadd.xlane.f32.xlu0 %v611
    %v613 = vpop.xlane.xlu0 %612
    %v614 = vsel %vm289, %v594, 0.0
    %615 = vadd.xlane.f32.xlu0 %v614
    %v616 = vpop.xlane.xlu0 %615
    %v617 = vsel %vm289, %v595, 0.0
    %618 = vadd.xlane.f32.xlu0 %v617
    %v619 = vpop.xlane.xlu0 %618
    %v620 = vadd.f32 %v598, 0.0
    %v621 = vadd.f32 %v601, 0.0
    %v622 = vadd.f32 %v604, 0.0
    %v623 = vadd.f32 %v607, 0.0
    %v624 = vadd.f32 %v610, 0.0
    %v625 = vadd.f32 %v613, 0.0
    %v626 = vadd.f32 %v616, 0.0
    %v627 = vadd.f32 %v619, 0.0
    %vm628 = vcmask 23568
    %629 = vst.msk [vmem:[#allocation3] sm:$0xff] %vm628, %v620
    %630 = vst.msk [vmem:[#allocation3 + $0x8] sm:$0xff] %vm628, %v621
    %631 = vst.msk [vmem:[#allocation3 + $0x10] sm:$0xff] %vm628, %v622
    %632 = vst.msk [vmem:[#allocation3 + $0x18] sm:$0xff] %vm628, %v623
    %633 = vst.msk [vmem:[#allocation3 + $0x20] sm:$0xff] %vm628, %v624
    %634 = vst.msk [vmem:[#allocation3 + $0x28] sm:$0xff] %vm628, %v625
    %635 = vst.msk [vmem:[#allocation3 + $0x30] sm:$0xff] %vm628, %v626
    %636 = vst.msk [vmem:[#allocation3 + $0x38] sm:$0xff] %vm628, %v627
    %s637 = sadd.s32 0, 3
    %s638 = smul.addr %s637, 2
    %s639 = scalar_lea.vmem [#allocation6], %s638
    %v640 = vld [vmem:[%s639] sm:$0x3]
    %641 = vst.msk [vmem:[#allocation2] sm:$0x3] %vm105, %v640
    %v643 = vcombine.low %v640, %v640
    %v645 = vunpack.c.l.s4 1983009808
    %v646 = vunpack.c.0.s8 %v645
    %v647 = vlaneseq
    %v648 = vshrl.u32 %v647, 7
    %v649 = vsub.s32 %v646, %v648
    %v650 = vrot.slane %v643, %v649
    %651 = vrot.lane.b32.xlu0 %v650, 127
    %v652 = vpop.permute.xlu0 %651
    %654 = vst.msk [vmem:[#allocation2] sm:$0xc] %vm119, %v652
    %v656 = vunpack.c.l.s4 1983009808
    %v657 = vunpack.c.0.s8 %v656
    %v658 = vlaneseq
    %v659 = vshrl.u32 %v658, 7
    %v660 = vsub.s32 %v657, %v659
    %v661 = vrot.slane %v640, %v660
    %662 = vrot.lane.b32.xlu0 %v661, 126
    %v663 = vpop.permute.xlu0 %662
    %665 = vst.msk [vmem:[#allocation2 + $0x4] sm:$0x3] %vm105, %v663
    %v666 = vld [vmem:[#allocation2] sm:$0xf]
    %v667 = vld [vmem:[#allocation2 + $0x4] sm:$0x3]
    %v670 = vunpack.c.l.b16 %v666
    %v671 = vunpack.c.l.b16 %v667
    %v672 = vpack.c.b16 %v671, %v670
    %v674 = vsel %vm212, %v672, 0
    %676 = vmatprep.subr.bf16.mxu0 0
    %677 = vmatpush1.bf16.msra.mxu0 %v674
    %678 = vmatprep.subr.bf16.mxu0 0
    %679 = vmatpush1.bf16.msra.mxu0 0
    %680 = vmatprep.subr.bf16.mxu0 0
    %681 = vmatpush1.bf16.msra.mxu0 0
    %682 = vmatprep.subr.bf16.mxu0 0
    %683 = vmatpush1.bf16.msra.mxu0 0
    %684 = vmatprep.subr.bf16.mxu0 0
    %685 = vmatpush1.bf16.msra.mxu0 0
    %686 = vmatprep.subr.bf16.mxu0 0
    %687 = vmatpush1.bf16.msra.mxu0 0
    %688 = vmatprep.subr.bf16.mxu0 0
    %689 = vmatpush1.bf16.msra.mxu0 0
    %690 = vmatprep.subr.bf16.mxu0 0
    %691 = vmatpush1.bf16.msra.mxu0 0
    %692 = vmatprep.subr.bf16.mxu0 0
    %693 = vmatpush1.bf16.msra.mxu0 0
    %694 = vmatprep.subr.bf16.mxu0 0
    %695 = vmatpush1.bf16.msra.mxu0 0
    %696 = vmatprep.subr.bf16.mxu0 0
    %697 = vmatpush1.bf16.msra.mxu0 0
    %698 = vmatprep.subr.bf16.mxu0 0
    %699 = vmatpush1.bf16.msra.mxu0 0
    %700 = vmatprep.subr.bf16.mxu0 0
    %701 = vmatpush1.bf16.msra.mxu0 0
    %702 = vmatprep.subr.bf16.mxu0 0
    %703 = vmatpush1.bf16.msra.mxu0 0
    %704 = vmatprep.subr.bf16.mxu0 0
    %705 = vmatpush1.bf16.msra.mxu0 0
    %706 = vmatprep.subr.bf16.mxu0 0
    %707 = vmatpush1.bf16.msra.mxu0 0
    %708 = vmatprep.mubr.bf16.mxu0 0
    %709 = vmatmul.mubr.bf16.gmra.mrb[0].mxu0 %v201
    %v710 = vpop.f32.mrb[0].mxu0
    %v711 = vadd.f32 %v137, %v710
    %v712 = vpop.f32.mrb[0].mxu0
    %v713 = vpop.f32.mrb[0].mxu0
    %v714 = vadd.f32 %v142, %v713
    %v715 = vpop.f32.mrb[0].mxu0
    %716 = vmatprep.mubr.bf16.mxu0 0
    %717 = vmatmul.mubr.bf16.gmra.mrb[0].mxu0 %v204
    %v718 = vpop.f32.mrb[0].mxu0
    %v719 = vadd.f32 %v147, %v718
    %v720 = vpop.f32.mrb[0].mxu0
    %v721 = vpop.f32.mrb[0].mxu0
    %v722 = vadd.f32 %v152, %v721
    %v723 = vpop.f32.mrb[0].mxu0
    %724 = vmatprep.mubr.bf16.mxu0 0
    %725 = vmatmul.mubr.bf16.gmra.mrb[0].mxu0 %v207
    %v726 = vpop.f32.mrb[0].mxu0
    %v727 = vadd.f32 %v157, %v726
    %v728 = vpop.f32.mrb[0].mxu0
    %v729 = vpop.f32.mrb[0].mxu0
    %v730 = vadd.f32 %v162, %v729
    %v731 = vpop.f32.mrb[0].mxu0
    %732 = vmatprep.mubr.bf16.mxu0 0
    %733 = vmatmul.mubr.bf16.gmra.mrb[0].mxu0 %v210
    %v734 = vpop.f32.mrb[0].mxu0
    %v735 = vadd.f32 %v167, %v734
    %v736 = vpop.f32.mrb[0].mxu0
    %v737 = vpop.f32.mrb[0].mxu0
    %v738 = vadd.f32 %v172, %v737
    %v739 = vpop.f32.mrb[0].mxu0
    %740 = vdwg.mxu0
    %v741 = vmax.f32 %v711, 0.0
    %v742 = vmax.f32 %v714, 0.0
    %v743 = vmax.f32 %v719, 0.0
    %v744 = vmax.f32 %v722, 0.0
    %v745 = vmax.f32 %v727, 0.0
    %v746 = vmax.f32 %v730, 0.0
    %v747 = vmax.f32 %v735, 0.0
    %v748 = vmax.f32 %v738, 0.0
    %v749 = vsel %vm289, %v741, 0.0
    %750 = vadd.xlane.f32.xlu0 %v749
    %v751 = vpop.xlane.xlu0 %750
    %v752 = vsel %vm289, %v742, 0.0
    %753 = vadd.xlane.f32.xlu0 %v752
    %v754 = vpop.xlane.xlu0 %753
    %v755 = vsel %vm289, %v743, 0.0
    %756 = vadd.xlane.f32.xlu0 %v755
    %v757 = vpop.xlane.xlu0 %756
    %v758 = vsel %vm289, %v744, 0.0
    %759 = vadd.xlane.f32.xlu0 %v758
    %v760 = vpop.xlane.xlu0 %759
    %v761 = vsel %vm289, %v745, 0.0
    %762 = vadd.xlane.f32.xlu0 %v761
    %v763 = vpop.xlane.xlu0 %762
    %v764 = vsel %vm289, %v746, 0.0
    %765 = vadd.xlane.f32.xlu0 %v764
    %v766 = vpop.xlane.xlu0 %765
    %v767 = vsel %vm289, %v747, 0.0
    %768 = vadd.xlane.f32.xlu0 %v767
    %v769 = vpop.xlane.xlu0 %768
    %v770 = vsel %vm289, %v748, 0.0
    %771 = vadd.xlane.f32.xlu0 %v770
    %v772 = vpop.xlane.xlu0 %771
    %v773 = vadd.f32 %v751, 0.0
    %v774 = vadd.f32 %v754, 0.0
    %v775 = vadd.f32 %v757, 0.0
    %v776 = vadd.f32 %v760, 0.0
    %v777 = vadd.f32 %v763, 0.0
    %v778 = vadd.f32 %v766, 0.0
    %v779 = vadd.f32 %v769, 0.0
    %v780 = vadd.f32 %v772, 0.0
    %vm781 = vcmask 31768
    %782 = vst.msk [vmem:[#allocation3] sm:$0xff] %vm781, %v773
    %783 = vst.msk [vmem:[#allocation3 + $0x8] sm:$0xff] %vm781, %v774
    %784 = vst.msk [vmem:[#allocation3 + $0x10] sm:$0xff] %vm781, %v775
    %785 = vst.msk [vmem:[#allocation3 + $0x18] sm:$0xff] %vm781, %v776
    %786 = vst.msk [vmem:[#allocation3 + $0x20] sm:$0xff] %vm781, %v777
    %787 = vst.msk [vmem:[#allocation3 + $0x28] sm:$0xff] %vm781, %v778
    %788 = vst.msk [vmem:[#allocation3 + $0x30] sm:$0xff] %vm781, %v779
    %789 = vst.msk [vmem:[#allocation3 + $0x38] sm:$0xff] %vm781, %v780
    %s790 = sadd.s32 0, 4
    %s791 = smul.addr %s790, 2
    %s792 = scalar_lea.vmem [#allocation6], %s791
    %v793 = vld [vmem:[%s792] sm:$0x3]
    %794 = vst.msk [vmem:[#allocation2] sm:$0x3] %vm105, %v793
    %v796 = vcombine.low %v793, %v793
    %v798 = vunpack.c.l.s4 1983009808
    %v799 = vunpack.c.0.s8 %v798
    %v800 = vlaneseq
    %v801 = vshrl.u32 %v800, 7
    %v802 = vsub.s32 %v799, %v801
    %v803 = vrot.slane %v796, %v802
    %804 = vrot.lane.b32.xlu0 %v803, 127
    %v805 = vpop.permute.xlu0 %804
    %807 = vst.msk [vmem:[#allocation2] sm:$0xc] %vm119, %v805
    %v809 = vunpack.c.l.s4 1983009808
    %v810 = vunpack.c.0.s8 %v809
    %v811 = vlaneseq
    %v812 = vshrl.u32 %v811, 7
    %v813 = vsub.s32 %v810, %v812
    %v814 = vrot.slane %v793, %v813
    %815 = vrot.lane.b32.xlu0 %v814, 126
    %v816 = vpop.permute.xlu0 %815
    %818 = vst.msk [vmem:[#allocation2 + $0x4] sm:$0x3] %vm105, %v816
    %v819 = vld [vmem:[#allocation2] sm:$0xf]
    %v820 = vld [vmem:[#allocation2 + $0x4] sm:$0x3]
    %v823 = vunpack.c.l.b16 %v819
    %v824 = vunpack.c.l.b16 %v820
    %v825 = vpack.c.b16 %v824, %v823
    %v827 = vsel %vm212, %v825, 0
    %829 = vmatprep.subr.bf16.mxu0 0
    %830 = vmatpush1.bf16.msra.mxu0 %v827
    %831 = vmatprep.subr.bf16.mxu0 0
    %832 = vmatpush1.bf16.msra.mxu0 0
    %833 = vmatprep.subr.bf16.mxu0 0
    %834 = vmatpush1.bf16.msra.mxu0 0
    %835 = vmatprep.subr.bf16.mxu0 0
    %836 = vmatpush1.bf16.msra.mxu0 0
    %837 = vmatprep.subr.bf16.mxu0 0
    %838 = vmatpush1.bf16.msra.mxu0 0
    %839 = vmatprep.subr.bf16.mxu0 0
    %840 = vmatpush1.bf16.msra.mxu0 0
    %841 = vmatprep.subr.bf16.mxu0 0
    %842 = vmatpush1.bf16.msra.mxu0 0
    %843 = vmatprep.subr.bf16.mxu0 0
    %844 = vmatpush1.bf16.msra.mxu0 0
    %845 = vmatprep.subr.bf16.mxu0 0
    %846 = vmatpush1.bf16.msra.mxu0 0
    %847 = vmatprep.subr.bf16.mxu0 0
    %848 = vmatpush1.bf16.msra.mxu0 0
    %849 = vmatprep.subr.bf16.mxu0 0
    %850 = vmatpush1.bf16.msra.mxu0 0
    %851 = vmatprep.subr.bf16.mxu0 0
    %852 = vmatpush1.bf16.msra.mxu0 0
    %853 = vmatprep.subr.bf16.mxu0 0
    %854 = vmatpush1.bf16.msra.mxu0 0
    %855 = vmatprep.subr.bf16.mxu0 0
    %856 = vmatpush1.bf16.msra.mxu0 0
    %857 = vmatprep.subr.bf16.mxu0 0
    %858 = vmatpush1.bf16.msra.mxu0 0
    %859 = vmatprep.subr.bf16.mxu0 0
    %860 = vmatpush1.bf16.msra.mxu0 0
    %861 = vmatprep.mubr.bf16.mxu0 0
    %862 = vmatmul.mubr.bf16.gmra.mrb[0].mxu0 %v201
    %v863 = vpop.f32.mrb[0].mxu0
    %v864 = vadd.f32 %v137, %v863
    %v865 = vpop.f32.mrb[0].mxu0
    %v866 = vpop.f32.mrb[0].mxu0
    %v867 = vadd.f32 %v142, %v866
    %v868 = vpop.f32.mrb[0].mxu0
    %869 = vmatprep.mubr.bf16.mxu0 0
    %870 = vmatmul.mubr.bf16.gmra.mrb[0].mxu0 %v204
    %v871 = vpop.f32.mrb[0].mxu0
    %v872 = vadd.f32 %v147, %v871
    %v873 = vpop.f32.mrb[0].mxu0
    %v874 = vpop.f32.mrb[0].mxu0
    %v875 = vadd.f32 %v152, %v874
    %v876 = vpop.f32.mrb[0].mxu0
    %877 = vmatprep.mubr.bf16.mxu0 0
    %878 = vmatmul.mubr.bf16.gmra.mrb[0].mxu0 %v207
    %v879 = vpop.f32.mrb[0].mxu0
    %v880 = vadd.f32 %v157, %v879
    %v881 = vpop.f32.mrb[0].mxu0
    %v882 = vpop.f32.mrb[0].mxu0
    %v883 = vadd.f32 %v162, %v882
    %v884 = vpop.f32.mrb[0].mxu0
    %885 = vmatprep.mubr.bf16.mxu0 0
    %886 = vmatmul.mubr.bf16.gmra.mrb[0].mxu0 %v210
    %v887 = vpop.f32.mrb[0].mxu0
    %v888 = vadd.f32 %v167, %v887
    %v889 = vpop.f32.mrb[0].mxu0
    %v890 = vpop.f32.mrb[0].mxu0
    %v891 = vadd.f32 %v172, %v890
    %v892 = vpop.f32.mrb[0].mxu0
    %893 = vdwg.mxu0
    %v894 = vmax.f32 %v864, 0.0
    %v895 = vmax.f32 %v867, 0.0
    %v896 = vmax.f32 %v872, 0.0
    %v897 = vmax.f32 %v875, 0.0
    %v898 = vmax.f32 %v880, 0.0
    %v899 = vmax.f32 %v883, 0.0
    %v900 = vmax.f32 %v888, 0.0
    %v901 = vmax.f32 %v891, 0.0
    %v902 = vsel %vm289, %v894, 0.0
    %903 = vadd.xlane.f32.xlu0 %v902
    %v904 = vpop.xlane.xlu0 %903
    %v905 = vsel %vm289, %v895, 0.0
    %906 = vadd.xlane.f32.xlu0 %v905
    %v907 = vpop.xlane.xlu0 %906
    %v908 = vsel %vm289, %v896, 0.0
    %909 = vadd.xlane.f32.xlu0 %v908
    %v910 = vpop.xlane.xlu0 %909
    %v911 = vsel %vm289, %v897, 0.0
    %912 = vadd.xlane.f32.xlu0 %v911
    %v913 = vpop.xlane.xlu0 %912
    %v914 = vsel %vm289, %v898, 0.0
    %915 = vadd.xlane.f32.xlu0 %v914
    %v916 = vpop.xlane.xlu0 %915
    %v917 = vsel %vm289, %v899, 0.0
    %918 = vadd.xlane.f32.xlu0 %v917
    %v919 = vpop.xlane.xlu0 %918
    %v920 = vsel %vm289, %v900, 0.0
    %921 = vadd.xlane.f32.xlu0 %v920
    %v922 = vpop.xlane.xlu0 %921
    %v923 = vsel %vm289, %v901, 0.0
    %924 = vadd.xlane.f32.xlu0 %v923
    %v925 = vpop.xlane.xlu0 %924
    %v926 = vadd.f32 %v904, 0.0
    %v927 = vadd.f32 %v907, 0.0
    %v928 = vadd.f32 %v910, 0.0
    %v929 = vadd.f32 %v913, 0.0
    %v930 = vadd.f32 %v916, 0.0
    %v931 = vadd.f32 %v919, 0.0
    %v932 = vadd.f32 %v922, 0.0
    %v933 = vadd.f32 %v925, 0.0
    %vm934 = vcmask 39968
    %935 = vst.msk [vmem:[#allocation3] sm:$0xff] %vm934, %v926
    %936 = vst.msk [vmem:[#allocation3 + $0x8] sm:$0xff] %vm934, %v927
    %937 = vst.msk [vmem:[#allocation3 + $0x10] sm:$0xff] %vm934, %v928
    %938 = vst.msk [vmem:[#allocation3 + $0x18] sm:$0xff] %vm934, %v929
    %939 = vst.msk [vmem:[#allocation3 + $0x20] sm:$0xff] %vm934, %v930
    %940 = vst.msk [vmem:[#allocation3 + $0x28] sm:$0xff] %vm934, %v931
    %941 = vst.msk [vmem:[#allocation3 + $0x30] sm:$0xff] %vm934, %v932
    %942 = vst.msk [vmem:[#allocation3 + $0x38] sm:$0xff] %vm934, %v933
    %s943 = sadd.s32 0, 5
    %s944 = smul.addr %s943, 2
    %s945 = scalar_lea.vmem [#allocation6], %s944
    %v946 = vld [vmem:[%s945] sm:$0x3]
    %947 = vst.msk [vmem:[#allocation2] sm:$0x3] %vm105, %v946
    %v949 = vcombine.low %v946, %v946
    %v951 = vunpack.c.l.s4 1983009808
    %v952 = vunpack.c.0.s8 %v951
    %v953 = vlaneseq
    %v954 = vshrl.u32 %v953, 7
    %v955 = vsub.s32 %v952, %v954
    %v956 = vrot.slane %v949, %v955
    %957 = vrot.lane.b32.xlu0 %v956, 127
    %v958 = vpop.permute.xlu0 %957
    %960 = vst.msk [vmem:[#allocation2] sm:$0xc] %vm119, %v958
    %v962 = vunpack.c.l.s4 1983009808
    %v963 = vunpack.c.0.s8 %v962
    %v964 = vlaneseq
    %v965 = vshrl.u32 %v964, 7
    %v966 = vsub.s32 %v963, %v965
    %v967 = vrot.slane %v946, %v966
    %968 = vrot.lane.b32.xlu0 %v967, 126
    %v969 = vpop.permute.xlu0 %968
    %971 = vst.msk [vmem:[#allocation2 + $0x4] sm:$0x3] %vm105, %v969
    %v972 = vld [vmem:[#allocation2] sm:$0xf]
    %v973 = vld [vmem:[#allocation2 + $0x4] sm:$0x3]
    %v976 = vunpack.c.l.b16 %v972
    %v977 = vunpack.c.l.b16 %v973
    %v978 = vpack.c.b16 %v977, %v976
    %v980 = vsel %vm212, %v978, 0
    %982 = vmatprep.subr.bf16.mxu0 0
    %983 = vmatpush1.bf16.msra.mxu0 %v980
    %984 = vmatprep.subr.bf16.mxu0 0
    %985 = vmatpush1.bf16.msra.mxu0 0
    %986 = vmatprep.subr.bf16.mxu0 0
    %987 = vmatpush1.bf16.msra.mxu0 0
    %988 = vmatprep.subr.bf16.mxu0 0
    %989 = vmatpush1.bf16.msra.mxu0 0
    %990 = vmatprep.subr.bf16.mxu0 0
    %991 = vmatpush1.bf16.msra.mxu0 0
    %992 = vmatprep.subr.bf16.mxu0 0
    %993 = vmatpush1.bf16.msra.mxu0 0
    %994 = vmatprep.subr.bf16.mxu0 0
    %995 = vmatpush1.bf16.msra.mxu0 0
    %996 = vmatprep.subr.bf16.mxu0 0
    %997 = vmatpush1.bf16.msra.mxu0 0
    %998 = vmatprep.subr.bf16.mxu0 0
    %999 = vmatpush1.bf16.msra.mxu0 0
    %1000 = vmatprep.subr.bf16.mxu0 0
    %1001 = vmatpush1.bf16.msra.mxu0 0
    %1002 = vmatprep.subr.bf16.mxu0 0
    %1003 = vmatpush1.bf16.msra.mxu0 0
    %1004 = vmatprep.subr.bf16.mxu0 0
    %1005 = vmatpush1.bf16.msra.mxu0 0
    %1006 = vmatprep.subr.bf16.mxu0 0
    %1007 = vmatpush1.bf16.msra.mxu0 0
    %1008 = vmatprep.subr.bf16.mxu0 0
    %1009 = vmatpush1.bf16.msra.mxu0 0
    %1010 = vmatprep.subr.bf16.mxu0 0
    %1011 = vmatpush1.bf16.msra.mxu0 0
    %1012 = vmatprep.subr.bf16.mxu0 0
    %1013 = vmatpush1.bf16.msra.mxu0 0
    %1014 = vmatprep.mubr.bf16.mxu0 0
    %1015 = vmatmul.mubr.bf16.gmra.mrb[0].mxu0 %v201
    %v1016 = vpop.f32.mrb[0].mxu0
    %v1017 = vadd.f32 %v137, %v1016
    %v1018 = vpop.f32.mrb[0].mxu0
    %v1019 = vpop.f32.mrb[0].mxu0
    %v1020 = vadd.f32 %v142, %v1019
    %v1021 = vpop.f32.mrb[0].mxu0
    %1022 = vmatprep.mubr.bf16.mxu0 0
    %1023 = vmatmul.mubr.bf16.gmra.mrb[0].mxu0 %v204
    %v1024 = vpop.f32.mrb[0].mxu0
    %v1025 = vadd.f32 %v147, %v1024
    %v1026 = vpop.f32.mrb[0].mxu0
    %v1027 = vpop.f32.mrb[0].mxu0
    %v1028 = vadd.f32 %v152, %v1027
    %v1029 = vpop.f32.mrb[0].mxu0
    %1030 = vmatprep.mubr.bf16.mxu0 0
    %1031 = vmatmul.mubr.bf16.gmra.mrb[0].mxu0 %v207
    %v1032 = vpop.f32.mrb[0].mxu0
    %v1033 = vadd.f32 %v157, %v1032
    %v1034 = vpop.f32.mrb[0].mxu0
    %v1035 = vpop.f32.mrb[0].mxu0
    %v1036 = vadd.f32 %v162, %v1035
    %v1037 = vpop.f32.mrb[0].mxu0
    %1038 = vmatprep.mubr.bf16.mxu0 0
    %1039 = vmatmul.mubr.bf16.gmra.mrb[0].mxu0 %v210
    %v1040 = vpop.f32.mrb[0].mxu0
    %v1041 = vadd.f32 %v167, %v1040
    %v1042 = vpop.f32.mrb[0].mxu0
    %v1043 = vpop.f32.mrb[0].mxu0
    %v1044 = vadd.f32 %v172, %v1043
    %v1045 = vpop.f32.mrb[0].mxu0
    %1046 = vdwg.mxu0
    %v1047 = vmax.f32 %v1017, 0.0
    %v1048 = vmax.f32 %v1020, 0.0
    %v1049 = vmax.f32 %v1025, 0.0
    %v1050 = vmax.f32 %v1028, 0.0
    %v1051 = vmax.f32 %v1033, 0.0
    %v1052 = vmax.f32 %v1036, 0.0
    %v1053 = vmax.f32 %v1041, 0.0
    %v1054 = vmax.f32 %v1044, 0.0
    %v1055 = vsel %vm289, %v1047, 0.0
    %1056 = vadd.xlane.f32.xlu0 %v1055
    %v1057 = vpop.xlane.xlu0 %1056
    %v1058 = vsel %vm289, %v1048, 0.0
    %1059 = vadd.xlane.f32.xlu0 %v1058
    %v1060 = vpop.xlane.xlu0 %1059
    %v1061 = vsel %vm289, %v1049, 0.0
    %1062 = vadd.xlane.f32.xlu0 %v1061
    %v1063 = vpop.xlane.xlu0 %1062
    %v1064 = vsel %vm289, %v1050, 0.0
    %1065 = vadd.xlane.f32.xlu0 %v1064
    %v1066 = vpop.xlane.xlu0 %1065
    %v1067 = vsel %vm289, %v1051, 0.0
    %1068 = vadd.xlane.f32.xlu0 %v1067
    %v1069 = vpop.xlane.xlu0 %1068
    %v1070 = vsel %vm289, %v1052, 0.0
    %1071 = vadd.xlane.f32.xlu0 %v1070
    %v1072 = vpop.xlane.xlu0 %1071
    %v1073 = vsel %vm289, %v1053, 0.0
    %1074 = vadd.xlane.f32.xlu0 %v1073
    %v1075 = vpop.xlane.xlu0 %1074
    %v1076 = vsel %vm289, %v1054, 0.0
    %1077 = vadd.xlane.f32.xlu0 %v1076
    %v1078 = vpop.xlane.xlu0 %1077
    %v1079 = vadd.f32 %v1057, 0.0
    %v1080 = vadd.f32 %v1060, 0.0
    %v1081 = vadd.f32 %v1063, 0.0
    %v1082 = vadd.f32 %v1066, 0.0
    %v1083 = vadd.f32 %v1069, 0.0
    %v1084 = vadd.f32 %v1072, 0.0
    %v1085 = vadd.f32 %v1075, 0.0
    %v1086 = vadd.f32 %v1078, 0.0
    %vm1087 = vcmask 48168
    %1088 = vst.msk [vmem:[#allocation3] sm:$0xff] %vm1087, %v1079
    %1089 = vst.msk [vmem:[#allocation3 + $0x8] sm:$0xff] %vm1087, %v1080
    %1090 = vst.msk [vmem:[#allocation3 + $0x10] sm:$0xff] %vm1087, %v1081
    %1091 = vst.msk [vmem:[#allocation3 + $0x18] sm:$0xff] %vm1087, %v1082
    %1092 = vst.msk [vmem:[#allocation3 + $0x20] sm:$0xff] %vm1087, %v1083
    %1093 = vst.msk [vmem:[#allocation3 + $0x28] sm:$0xff] %vm1087, %v1084
    %1094 = vst.msk [vmem:[#allocation3 + $0x30] sm:$0xff] %vm1087, %v1085
    %1095 = vst.msk [vmem:[#allocation3 + $0x38] sm:$0xff] %vm1087, %v1086
    %s1096 = sadd.s32 0, 6
    %s1097 = smul.addr %s1096, 2
    %s1098 = scalar_lea.vmem [#allocation6], %s1097
    %v1099 = vld [vmem:[%s1098] sm:$0x3]
    %1100 = vst.msk [vmem:[#allocation2] sm:$0x3] %vm105, %v1099
    %v1102 = vcombine.low %v1099, %v1099
    %v1104 = vunpack.c.l.s4 1983009808
    %v1105 = vunpack.c.0.s8 %v1104
    %v1106 = vlaneseq
    %v1107 = vshrl.u32 %v1106, 7
    %v1108 = vsub.s32 %v1105, %v1107
    %v1109 = vrot.slane %v1102, %v1108
    %1110 = vrot.lane.b32.xlu0 %v1109, 127
    %v1111 = vpop.permute.xlu0 %1110
    %1113 = vst.msk [vmem:[#allocation2] sm:$0xc] %vm119, %v1111
    %v1115 = vunpack.c.l.s4 1983009808
    %v1116 = vunpack.c.0.s8 %v1115
    %v1117 = vlaneseq
    %v1118 = vshrl.u32 %v1117, 7
    %v1119 = vsub.s32 %v1116, %v1118
    %v1120 = vrot.slane %v1099, %v1119
    %1121 = vrot.lane.b32.xlu0 %v1120, 126
    %v1122 = vpop.permute.xlu0 %1121
    %1124 = vst.msk [vmem:[#allocation2 + $0x4] sm:$0x3] %vm105, %v1122
    %v1125 = vld [vmem:[#allocation2] sm:$0xf]
    %v1126 = vld [vmem:[#allocation2 + $0x4] sm:$0x3]
    %v1129 = vunpack.c.l.b16 %v1125
    %v1130 = vunpack.c.l.b16 %v1126
    %v1131 = vpack.c.b16 %v1130, %v1129
    %v1133 = vsel %vm212, %v1131, 0
    %1135 = vmatprep.subr.bf16.mxu0 0
    %1136 = vmatpush1.bf16.msra.mxu0 %v1133
    %1137 = vmatprep.subr.bf16.mxu0 0
    %1138 = vmatpush1.bf16.msra.mxu0 0
    %1139 = vmatprep.subr.bf16.mxu0 0
    %1140 = vmatpush1.bf16.msra.mxu0 0
    %1141 = vmatprep.subr.bf16.mxu0 0
    %1142 = vmatpush1.bf16.msra.mxu0 0
    %1143 = vmatprep.subr.bf16.mxu0 0
    %1144 = vmatpush1.bf16.msra.mxu0 0
    %1145 = vmatprep.subr.bf16.mxu0 0
    %1146 = vmatpush1.bf16.msra.mxu0 0
    %1147 = vmatprep.subr.bf16.mxu0 0
    %1148 = vmatpush1.bf16.msra.mxu0 0
    %1149 = vmatprep.subr.bf16.mxu0 0
    %1150 = vmatpush1.bf16.msra.mxu0 0
    %1151 = vmatprep.subr.bf16.mxu0 0
    %1152 = vmatpush1.bf16.msra.mxu0 0
    %1153 = vmatprep.subr.bf16.mxu0 0
    %1154 = vmatpush1.bf16.msra.mxu0 0
    %1155 = vmatprep.subr.bf16.mxu0 0
    %1156 = vmatpush1.bf16.msra.mxu0 0
    %1157 = vmatprep.subr.bf16.mxu0 0
    %1158 = vmatpush1.bf16.msra.mxu0 0
    %1159 = vmatprep.subr.bf16.mxu0 0
    %1160 = vmatpush1.bf16.msra.mxu0 0
    %1161 = vmatprep.subr.bf16.mxu0 0
    %1162 = vmatpush1.bf16.msra.mxu0 0
    %1163 = vmatprep.subr.bf16.mxu0 0
    %1164 = vmatpush1.bf16.msra.mxu0 0
    %1165 = vmatprep.subr.bf16.mxu0 0
    %1166 = vmatpush1.bf16.msra.mxu0 0
    %1167 = vmatprep.mubr.bf16.mxu0 0
    %1168 = vmatmul.mubr.bf16.gmra.mrb[0].mxu0 %v201
    %v1169 = vpop.f32.mrb[0].mxu0
    %v1170 = vadd.f32 %v137, %v1169
    %v1171 = vpop.f32.mrb[0].mxu0
    %v1172 = vpop.f32.mrb[0].mxu0
    %v1173 = vadd.f32 %v142, %v1172
    %v1174 = vpop.f32.mrb[0].mxu0
    %1175 = vmatprep.mubr.bf16.mxu0 0
    %1176 = vmatmul.mubr.bf16.gmra.mrb[0].mxu0 %v204
    %v1177 = vpop.f32.mrb[0].mxu0
    %v1178 = vadd.f32 %v147, %v1177
    %v1179 = vpop.f32.mrb[0].mxu0
    %v1180 = vpop.f32.mrb[0].mxu0
    %v1181 = vadd.f32 %v152, %v1180
    %v1182 = vpop.f32.mrb[0].mxu0
    %1183 = vmatprep.mubr.bf16.mxu0 0
    %1184 = vmatmul.mubr.bf16.gmra.mrb[0].mxu0 %v207
    %v1185 = vpop.f32.mrb[0].mxu0
    %v1186 = vadd.f32 %v157, %v1185
    %v1187 = vpop.f32.mrb[0].mxu0
    %v1188 = vpop.f32.mrb[0].mxu0
    %v1189 = vadd.f32 %v162, %v1188
    %v1190 = vpop.f32.mrb[0].mxu0
    %1191 = vmatprep.mubr.bf16.mxu0 0
    %1192 = vmatmul.mubr.bf16.gmra.mrb[0].mxu0 %v210
    %v1193 = vpop.f32.mrb[0].mxu0
    %v1194 = vadd.f32 %v167, %v1193
    %v1195 = vpop.f32.mrb[0].mxu0
    %v1196 = vpop.f32.mrb[0].mxu0
    %v1197 = vadd.f32 %v172, %v1196
    %v1198 = vpop.f32.mrb[0].mxu0
    %1199 = vdwg.mxu0
    %v1200 = vmax.f32 %v1170, 0.0
    %v1201 = vmax.f32 %v1173, 0.0
    %v1202 = vmax.f32 %v1178, 0.0
    %v1203 = vmax.f32 %v1181, 0.0
    %v1204 = vmax.f32 %v1186, 0.0
    %v1205 = vmax.f32 %v1189, 0.0
    %v1206 = vmax.f32 %v1194, 0.0
    %v1207 = vmax.f32 %v1197, 0.0
    %v1208 = vsel %vm289, %v1200, 0.0
    %1209 = vadd.xlane.f32.xlu0 %v1208
    %v1210 = vpop.xlane.xlu0 %1209
    %v1211 = vsel %vm289, %v1201, 0.0
    %1212 = vadd.xlane.f32.xlu0 %v1211
    %v1213 = vpop.xlane.xlu0 %1212
    %v1214 = vsel %vm289, %v1202, 0.0
    %1215 = vadd.xlane.f32.xlu0 %v1214
    %v1216 = vpop.xlane.xlu0 %1215
    %v1217 = vsel %vm289, %v1203, 0.0
    %1218 = vadd.xlane.f32.xlu0 %v1217
    %v1219 = vpop.xlane.xlu0 %1218
    %v1220 = vsel %vm289, %v1204, 0.0
    %1221 = vadd.xlane.f32.xlu0 %v1220
    %v1222 = vpop.xlane.xlu0 %1221
    %v1223 = vsel %vm289, %v1205, 0.0
    %1224 = vadd.xlane.f32.xlu0 %v1223
    %v1225 = vpop.xlane.xlu0 %1224
    %v1226 = vsel %vm289, %v1206, 0.0
    %1227 = vadd.xlane.f32.xlu0 %v1226
    %v1228 = vpop.xlane.xlu0 %1227
    %v1229 = vsel %vm289, %v1207, 0.0
    %1230 = vadd.xlane.f32.xlu0 %v1229
    %v1231 = vpop.xlane.xlu0 %1230
    %v1232 = vadd.f32 %v1210, 0.0
    %v1233 = vadd.f32 %v1213, 0.0
    %v1234 = vadd.f32 %v1216, 0.0
    %v1235 = vadd.f32 %v1219, 0.0
    %v1236 = vadd.f32 %v1222, 0.0
    %v1237 = vadd.f32 %v1225, 0.0
    %v1238 = vadd.f32 %v1228, 0.0
    %v1239 = vadd.f32 %v1231, 0.0
    %vm1240 = vcmask 56368
    %1241 = vst.msk [vmem:[#allocation3] sm:$0xff] %vm1240, %v1232
    %1242 = vst.msk [vmem:[#allocation3 + $0x8] sm:$0xff] %vm1240, %v1233
    %1243 = vst.msk [vmem:[#allocation3 + $0x10] sm:$0xff] %vm1240, %v1234
    %1244 = vst.msk [vmem:[#allocation3 + $0x18] sm:$0xff] %vm1240, %v1235
    %1245 = vst.msk [vmem:[#allocation3 + $0x20] sm:$0xff] %vm1240, %v1236
    %1246 = vst.msk [vmem:[#allocation3 + $0x28] sm:$0xff] %vm1240, %v1237
    %1247 = vst.msk [vmem:[#allocation3 + $0x30] sm:$0xff] %vm1240, %v1238
    %1248 = vst.msk [vmem:[#allocation3 + $0x38] sm:$0xff] %vm1240, %v1239
    %s1249 = sadd.s32 0, 7
    %s1250 = smul.addr %s1249, 2
    %s1251 = scalar_lea.vmem [#allocation6], %s1250
    %v1252 = vld [vmem:[%s1251] sm:$0x3]
    %1253 = vst.msk [vmem:[#allocation2] sm:$0x3] %vm105, %v1252
    %v1255 = vcombine.low %v1252, %v1252
    %v1257 = vunpack.c.l.s4 1983009808
    %v1258 = vunpack.c.0.s8 %v1257
    %v1259 = vlaneseq
    %v1260 = vshrl.u32 %v1259, 7
    %v1261 = vsub.s32 %v1258, %v1260
    %v1262 = vrot.slane %v1255, %v1261
    %1263 = vrot.lane.b32.xlu0 %v1262, 127
    %v1264 = vpop.permute.xlu0 %1263
    %1266 = vst.msk [vmem:[#allocation2] sm:$0xc] %vm119, %v1264
    %v1268 = vunpack.c.l.s4 1983009808
    %v1269 = vunpack.c.0.s8 %v1268
    %v1270 = vlaneseq
    %v1271 = vshrl.u32 %v1270, 7
    %v1272 = vsub.s32 %v1269, %v1271
    %v1273 = vrot.slane %v1252, %v1272
    %1274 = vrot.lane.b32.xlu0 %v1273, 126
    %v1275 = vpop.permute.xlu0 %1274
    %1277 = vst.msk [vmem:[#allocation2 + $0x4] sm:$0x3] %vm105, %v1275
    %v1278 = vld [vmem:[#allocation2] sm:$0xf]
    %v1279 = vld [vmem:[#allocation2 + $0x4] sm:$0x3]
    %v1282 = vunpack.c.l.b16 %v1278
    %v1283 = vunpack.c.l.b16 %v1279
    %v1284 = vpack.c.b16 %v1283, %v1282
    %v1286 = vsel %vm212, %v1284, 0
    %1288 = vmatprep.subr.bf16.mxu0 0
    %1289 = vmatpush1.bf16.msra.mxu0 %v1286
    %1290 = vmatprep.subr.bf16.mxu0 0
    %1291 = vmatpush1.bf16.msra.mxu0 0
    %1292 = vmatprep.subr.bf16.mxu0 0
    %1293 = vmatpush1.bf16.msra.mxu0 0
    %1294 = vmatprep.subr.bf16.mxu0 0
    %1295 = vmatpush1.bf16.msra.mxu0 0
    %1296 = vmatprep.subr.bf16.mxu0 0
    %1297 = vmatpush1.bf16.msra.mxu0 0
    %1298 = vmatprep.subr.bf16.mxu0 0
    %1299 = vmatpush1.bf16.msra.mxu0 0
    %1300 = vmatprep.subr.bf16.mxu0 0
    %1301 = vmatpush1.bf16.msra.mxu0 0
    %1302 = vmatprep.subr.bf16.mxu0 0
    %1303 = vmatpush1.bf16.msra.mxu0 0
    %1304 = vmatprep.subr.bf16.mxu0 0
    %1305 = vmatpush1.bf16.msra.mxu0 0
    %1306 = vmatprep.subr.bf16.mxu0 0
    %1307 = vmatpush1.bf16.msra.mxu0 0
    %1308 = vmatprep.subr.bf16.mxu0 0
    %1309 = vmatpush1.bf16.msra.mxu0 0
    %1310 = vmatprep.subr.bf16.mxu0 0
    %1311 = vmatpush1.bf16.msra.mxu0 0
    %1312 = vmatprep.subr.bf16.mxu0 0
    %1313 = vmatpush1.bf16.msra.mxu0 0
    %1314 = vmatprep.subr.bf16.mxu0 0
    %1315 = vmatpush1.bf16.msra.mxu0 0
    %1316 = vmatprep.subr.bf16.mxu0 0
    %1317 = vmatpush1.bf16.msra.mxu0 0
    %1318 = vmatprep.subr.bf16.mxu0 0
    %1319 = vmatpush1.bf16.msra.mxu0 0
    %1320 = vmatprep.mubr.bf16.mxu0 0
    %1321 = vmatmul.mubr.bf16.gmra.mrb[0].mxu0 %v201
    %v1322 = vpop.f32.mrb[0].mxu0
    %v1323 = vadd.f32 %v137, %v1322
    %v1324 = vpop.f32.mrb[0].mxu0
    %v1325 = vpop.f32.mrb[0].mxu0
    %v1326 = vadd.f32 %v142, %v1325
    %v1327 = vpop.f32.mrb[0].mxu0
    %1328 = vmatprep.mubr.bf16.mxu0 0
    %1329 = vmatmul.mubr.bf16.gmra.mrb[0].mxu0 %v204
    %v1330 = vpop.f32.mrb[0].mxu0
    %v1331 = vadd.f32 %v147, %v1330
    %v1332 = vpop.f32.mrb[0].mxu0
    %v1333 = vpop.f32.mrb[0].mxu0
    %v1334 = vadd.f32 %v152, %v1333
    %v1335 = vpop.f32.mrb[0].mxu0
    %1336 = vmatprep.mubr.bf16.mxu0 0
    %1337 = vmatmul.mubr.bf16.gmra.mrb[0].mxu0 %v207
    %v1338 = vpop.f32.mrb[0].mxu0
    %v1339 = vadd.f32 %v157, %v1338
    %v1340 = vpop.f32.mrb[0].mxu0
    %v1341 = vpop.f32.mrb[0].mxu0
    %v1342 = vadd.f32 %v162, %v1341
    %v1343 = vpop.f32.mrb[0].mxu0
    %1344 = vmatprep.mubr.bf16.mxu0 0
    %1345 = vmatmul.mubr.bf16.gmra.mrb[0].mxu0 %v210
    %v1346 = vpop.f32.mrb[0].mxu0
    %v1347 = vadd.f32 %v167, %v1346
    %v1348 = vpop.f32.mrb[0].mxu0
    %v1349 = vpop.f32.mrb[0].mxu0
    %v1350 = vadd.f32 %v172, %v1349
    %v1351 = vpop.f32.mrb[0].mxu0
    %1352 = vdwg.mxu0
    %v1353 = vmax.f32 %v1323, 0.0
    %v1354 = vmax.f32 %v1326, 0.0
    %v1355 = vmax.f32 %v1331, 0.0
    %v1356 = vmax.f32 %v1334, 0.0
    %v1357 = vmax.f32 %v1339, 0.0
    %v1358 = vmax.f32 %v1342, 0.0
    %v1359 = vmax.f32 %v1347, 0.0
    %v1360 = vmax.f32 %v1350, 0.0
    %v1361 = vsel %vm289, %v1353, 0.0
    %1362 = vadd.xlane.f32.xlu0 %v1361
    %v1363 = vpop.xlane.xlu0 %1362
    %v1364 = vsel %vm289, %v1354, 0.0
    %1365 = vadd.xlane.f32.xlu0 %v1364
    %v1366 = vpop.xlane.xlu0 %1365
    %v1367 = vsel %vm289, %v1355, 0.0
    %1368 = vadd.xlane.f32.xlu0 %v1367
    %v1369 = vpop.xlane.xlu0 %1368
    %v1370 = vsel %vm289, %v1356, 0.0
    %1371 = vadd.xlane.f32.xlu0 %v1370
    %v1372 = vpop.xlane.xlu0 %1371
    %v1373 = vsel %vm289, %v1357, 0.0
    %1374 = vadd.xlane.f32.xlu0 %v1373
    %v1375 = vpop.xlane.xlu0 %1374
    %v1376 = vsel %vm289, %v1358, 0.0
    %1377 = vadd.xlane.f32.xlu0 %v1376
    %v1378 = vpop.xlane.xlu0 %1377
    %v1379 = vsel %vm289, %v1359, 0.0
    %1380 = vadd.xlane.f32.xlu0 %v1379
    %v1381 = vpop.xlane.xlu0 %1380
    %v1382 = vsel %vm289, %v1360, 0.0
    %1383 = vadd.xlane.f32.xlu0 %v1382
    %v1384 = vpop.xlane.xlu0 %1383
    %v1385 = vadd.f32 %v1363, 0.0
    %v1386 = vadd.f32 %v1366, 0.0
    %v1387 = vadd.f32 %v1369, 0.0
    %v1388 = vadd.f32 %v1372, 0.0
    %v1389 = vadd.f32 %v1375, 0.0
    %v1390 = vadd.f32 %v1378, 0.0
    %v1391 = vadd.f32 %v1381, 0.0
    %v1392 = vadd.f32 %v1384, 0.0
    %vm1393 = vcmask 64568
    %1394 = vst.msk [vmem:[#allocation3] sm:$0xff] %vm1393, %v1385
    %1395 = vst.msk [vmem:[#allocation3 + $0x8] sm:$0xff] %vm1393, %v1386
    %1396 = vst.msk [vmem:[#allocation3 + $0x10] sm:$0xff] %vm1393, %v1387
    %1397 = vst.msk [vmem:[#allocation3 + $0x18] sm:$0xff] %vm1393, %v1388
    %1398 = vst.msk [vmem:[#allocation3 + $0x20] sm:$0xff] %vm1393, %v1389
    %1399 = vst.msk [vmem:[#allocation3 + $0x28] sm:$0xff] %vm1393, %v1390
    %1400 = vst.msk [vmem:[#allocation3 + $0x30] sm:$0xff] %vm1393, %v1391
    %1401 = vst.msk [vmem:[#allocation3 + $0x38] sm:$0xff] %vm1393, %v1392
    %v1402 = vld [vmem:[#allocation3] sm:$0xff]
    %v1403 = vld [vmem:[#allocation3 + $0x8] sm:$0xff]
    %v1404 = vld [vmem:[#allocation3 + $0x10] sm:$0xff]
    %v1405 = vld [vmem:[#allocation3 + $0x18] sm:$0xff]
    %1406 = vxpose.xlu0.b32.start [1/16] %v1402, 128
    %1407 = vxpose.xlu0.b32.cont [2/16] %v1403, 128
    %1408 = vxpose.xlu0.b32.cont [3/16] %v1404, 128
    %1409 = vxpose.xlu0.b32.cont [4/16] %v1405, 128
    %1410 = vxpose.xlu0.b32.cont [5/16] 0.0, 128
    %1411 = vxpose.xlu0.b32.cont [6/16] 0.0, 128
    %1412 = vxpose.xlu0.b32.cont [7/16] 0.0, 128
    %1413 = vxpose.xlu0.b32.cont [8/16] 0.0, 128
    %1414 = vxpose.xlu0.b32.cont [9/16] 0.0, 128
    %1415 = vxpose.xlu0.b32.cont [10/16] 0.0, 128
    %1416 = vxpose.xlu0.b32.cont [11/16] 0.0, 128
    %1417 = vxpose.xlu0.b32.cont [12/16] 0.0, 128
    %1418 = vxpose.xlu0.b32.cont [13/16] 0.0, 128
    %1419 = vxpose.xlu0.b32.cont [14/16] 0.0, 128
    %1420 = vxpose.xlu0.b32.cont [15/16] 0.0, 128
    %1421 = vxpose.xlu0.b32.end [16/16] 0.0, 128
    %v1422 = vpop.trf.xlu0
    %v1423 = vpop.trf.xlu0
    %v1424 = vpop.trf.xlu0
    %v1425 = vpop.trf.xlu0
    %v1426 = vpop.trf.xlu0
    %v1427 = vpop.trf.xlu0
    %v1428 = vpop.trf.xlu0
    %v1429 = vpop.trf.xlu0
    %v1430 = vpop.trf.xlu0
    %v1431 = vpop.trf.xlu0
    %v1432 = vpop.trf.xlu0
    %v1433 = vpop.trf.xlu0
    %v1434 = vpop.trf.xlu0
    %v1435 = vpop.trf.xlu0
    %v1436 = vpop.trf.xlu0
    %v1437 = vpop.trf.xlu0
    %vm1438 = vcmask 261120
    %1439 = vst.msk [vmem:[#allocation4] sm:$0xff] %vm1438, %v1422
    %v1440 = vld [vmem:[#allocation3 + $0x20] sm:$0xff]
    %v1441 = vld [vmem:[#allocation3 + $0x28] sm:$0xff]
    %v1442 = vld [vmem:[#allocation3 + $0x30] sm:$0xff]
    %v1443 = vld [vmem:[#allocation3 + $0x38] sm:$0xff]
    %1444 = vxpose.xlu0.b32.start [1/16] %v1440, 128
    %1445 = vxpose.xlu0.b32.cont [2/16] %v1441, 128
    %1446 = vxpose.xlu0.b32.cont [3/16] %v1442, 128
    %1447 = vxpose.xlu0.b32.cont [4/16] %v1443, 128
    %1448 = vxpose.xlu0.b32.cont [5/16] 0.0, 128
    %1449 = vxpose.xlu0.b32.cont [6/16] 0.0, 128
    %1450 = vxpose.xlu0.b32.cont [7/16] 0.0, 128
    %1451 = vxpose.xlu0.b32.cont [8/16] 0.0, 128
    %1452 = vxpose.xlu0.b32.cont [9/16] 0.0, 128
    %1453 = vxpose.xlu0.b32.cont [10/16] 0.0, 128
    %1454 = vxpose.xlu0.b32.cont [11/16] 0.0, 128
    %1455 = vxpose.xlu0.b32.cont [12/16] 0.0, 128
    %1456 = vxpose.xlu0.b32.cont [13/16] 0.0, 128
    %1457 = vxpose.xlu0.b32.cont [14/16] 0.0, 128
    %1458 = vxpose.xlu0.b32.cont [15/16] 0.0, 128
    %1459 = vxpose.xlu0.b32.end [16/16] 0.0, 128
    %v1460 = vpop.trf.xlu0
    %v1461 = vpop.trf.xlu0
    %v1462 = vpop.trf.xlu0
    %v1463 = vpop.trf.xlu0
    %v1464 = vpop.trf.xlu0
    %v1465 = vpop.trf.xlu0
    %v1466 = vpop.trf.xlu0
    %v1467 = vpop.trf.xlu0
    %v1468 = vpop.trf.xlu0
    %v1469 = vpop.trf.xlu0
    %v1470 = vpop.trf.xlu0
    %v1471 = vpop.trf.xlu0
    %v1472 = vpop.trf.xlu0
    %v1473 = vpop.trf.xlu0
    %v1474 = vpop.trf.xlu0
    %v1475 = vpop.trf.xlu0
    %1476 = vst.msk [vmem:[#allocation5] sm:$0xff] %vm1438, %v1460
    %v1477 = vld [vmem:[#allocation4] sm:$0xff]
    %v1478 = vld [vmem:[#allocation5] sm:$0xff]
    %v1479 = vld [vmem:[#allocation12] sm:$0xff]
    %v1480 = vld [vmem:[#allocation12 + $0x8] sm:$0xff]
    %v1481 = vld [vmem:[#allocation12 + $0x10] sm:$0xff]
    %v1482 = vld [vmem:[#allocation12 + $0x18] sm:$0xff]
    %v1483 = vld [vmem:[#allocation14] sm:$0x1]
    %v1484 = vadd.f32 %v1477, %v1478
    %v1486 = vlaneseq
    %v1487 = vshrl.u32 %v1486, 7
    %v1488 = vsub.s32 0, %v1487
    %v1489 = vrot.slane %v1483, %v1488
    %v1492 = vsel %vm1438, %v1484, 0
    %1494 = vmatprep.subr.mxu0 0.0
    %1495 = vmatpush1.msra.mxu0 %v1479
    %1496 = vmatprep.subr.mxu0 0.0
    %1497 = vmatpush1.msra.mxu0 %v1480
    %1498 = vmatprep.subr.mxu0 0.0
    %1499 = vmatpush1.msra.mxu0 %v1481
    %1500 = vmatprep.subr.mxu0 0.0
    %1501 = vmatpush1.msra.mxu0 %v1482
    %1502 = vmatprep.subr.mxu0 0.0
    %1503 = vmatpush1.msra.mxu0 0.0
    %1504 = vmatprep.subr.mxu0 0.0
    %1505 = vmatpush1.msra.mxu0 0.0
    %1506 = vmatprep.subr.mxu0 0.0
    %1507 = vmatpush1.msra.mxu0 0.0
    %1508 = vmatprep.subr.mxu0 0.0
    %1509 = vmatpush1.msra.mxu0 0.0
    %1510 = vmatprep.subr.mxu0 0.0
    %1511 = vmatpush1.msra.mxu0 0.0
    %1512 = vmatprep.subr.mxu0 0.0
    %1513 = vmatpush1.msra.mxu0 0.0
    %1514 = vmatprep.subr.mxu0 0.0
    %1515 = vmatpush1.msra.mxu0 0.0
    %1516 = vmatprep.subr.mxu0 0.0
    %1517 = vmatpush1.msra.mxu0 0.0
    %1518 = vmatprep.subr.mxu0 0.0
    %1519 = vmatpush1.msra.mxu0 0.0
    %1520 = vmatprep.subr.mxu0 0.0
    %1521 = vmatpush1.msra.mxu0 0.0
    %1522 = vmatprep.subr.mxu0 0.0
    %1523 = vmatpush1.msra.mxu0 0.0
    %1524 = vmatprep.subr.mxu0 0.0
    %1525 = vmatpush1.msra.mxu0 0.0
    %1526 = vmatprep.subr.mxu0 0.0
    %1527 = vmatpush1.msra.mxu0 0.0
    %1528 = vmatprep.subr.mxu0 0.0
    %1529 = vmatpush1.msra.mxu0 0.0
    %1530 = vmatprep.subr.mxu0 0.0
    %1531 = vmatpush1.msra.mxu0 0.0
    %1532 = vmatprep.subr.mxu0 0.0
    %1533 = vmatpush1.msra.mxu0 0.0
    %1534 = vmatprep.subr.mxu0 0.0
    %1535 = vmatpush1.msra.mxu0 0.0
    %1536 = vmatprep.subr.mxu0 0.0
    %1537 = vmatpush1.msra.mxu0 0.0
    %1538 = vmatprep.subr.mxu0 0.0
    %1539 = vmatpush1.msra.mxu0 0.0
    %1540 = vmatprep.subr.mxu0 0.0
    %1541 = vmatpush1.msra.mxu0 0.0
    %1542 = vmatprep.subr.mxu0 0.0
    %1543 = vmatpush1.msra.mxu0 0.0
    %1544 = vmatprep.subr.mxu0 0.0
    %1545 = vmatpush1.msra.mxu0 0.0
    %1546 = vmatprep.subr.mxu0 0.0
    %1547 = vmatpush1.msra.mxu0 0.0
    %1548 = vmatprep.subr.mxu0 0.0
    %1549 = vmatpush1.msra.mxu0 0.0
    %1550 = vmatprep.subr.mxu0 0.0
    %1551 = vmatpush1.msra.mxu0 0.0
    %1552 = vmatprep.subr.mxu0 0.0
    %1553 = vmatpush1.msra.mxu0 0.0
    %1554 = vmatprep.subr.mxu0 0.0
    %1555 = vmatpush1.msra.mxu0 0.0
    %1556 = vmatprep.subr.mxu0 0.0
    %1557 = vmatpush1.msra.mxu0 0.0
    %1558 = vmatprep.mubr.f32.mxu0 0.0
    %1559 = vmatmul.mubr.f32.gmra.mrb[0].mxu0 %v1492
    %v1560 = vpop.f32.mrb[0].mxu0
    %v1561 = vadd.f32 %v1489, %v1560
    %v1562 = vpop.f32.mrb[0].mxu0
    %1563 = vdwg.mxu0
    %vm1564 = vcmask 64512
    %1565 = vst.msk [vmem:[#allocation15] sm:$0xff] %vm1564, %v1561
    // Predicated region
    $region42: #{tpu_custom_call.1} parent=1 // pred_check
      _
    $region43: #{tpu_custom_call.1} parent=1 // pred_check_branch
      %1567 = sbr.rel (0) target = $region45
    $region44: #{tpu_custom_call.1} parent=1 // pred_region
      %s1569 = ssub.s32 128, 128
      %1570 = vsyncadd [#allocation8], %s1569
      %s1572 = sshll.u32 [#allocation15], 4
      %s1573 = int_to_ptr.vmem [resolvable:$true] %s1572
      %1575 = dma.vmem_to_hbm [thread:$0]  %s1573, 128, %s5, [#allocation8]
    $region45: #{tpu_custom_call.1} parent=1 // pred_fallthru
      _
    // Predicated region
    $region46: #{tpu_custom_call.1} parent=1 // pred_check
      _
    $region47: #{tpu_custom_call.1} parent=1 // pred_check_branch
      %1577 = sbr.rel (0) target = $region49
    $region48: #{tpu_custom_call.1} parent=1 // pred_region
      %1578 = dma.done [#allocation8], 128
    $region49: #{tpu_custom_call.1} parent=1 // pred_fallthru
      _
    %1579 = vsyncpa [#allocation7], 1
    %1580 = vsyncpa [#allocation10], 1
    %1581 = vsyncpa [#allocation13], 1
    %1582 = vsyncpa [#allocation8], 1

</llo_original>
